<compile_context>
chip_gen: v7x
topology: tpu7x:2x2x1
jax: 0.10.0
libtpu: 0.0.40
codegen_flags: <defaults>
</compile_context>

<pallas_src>
import math

import jax
import jax.numpy as jnp
from jax.experimental import pallas as pl
from jax.experimental.pallas import tpu as pltpu

LANE = 128       # TPU lane width
SUBLANE = 8
MAX_TM = 1024    # max rows per grid step
TARGET_STEPS = 8 # aim for ~8 grid steps (>=2 needed for v7x megacore sharding)


def _ceil_to(x, m):
    return (x + m - 1) // m * m


def _silu(x):
    # x * sigmoid(x) == x * 0.5 * (tanh(x/2) + 1): one EUP op (tanh) per element
    # instead of two (exp + reciprocal).  Stays in f32 (v5e has no bf16 VPU/EUP).
    return x * (0.5 * jnp.tanh(0.5 * x) + 0.5)


def _choose_tm(n_rows):
    """Row tile: multiple of 128 (required by lane-packed output), <= MAX_TM,
    sized so the grid keeps ~TARGET_STEPS steps."""
    n_blocks = -(-max(n_rows, 1) // LANE)
    blocks_per_tile = max(1, min(MAX_TM // LANE, -(-n_blocks // TARGET_STEPS)))
    return blocks_per_tile * LANE


# ----------------------------------------------------------------------------
# Kernel
# ----------------------------------------------------------------------------
def _make_kernel(num_branches, num_hidden, tm, pack_output):
    """Ref order: x_0..x_{nb-1}, W_0..W_{nb-1}, b_branch, (W_h, b_h)*nh, out."""
    g = tm // LANE

    def kernel(*refs):
        xs = refs[:num_branches]
        wbs = refs[num_branches:2 * num_branches]
        bb_ref = refs[2 * num_branches]
        h_refs = refs[2 * num_branches + 1:-1]
        out_ref = refs[-1]

        # Fused branch layer: sum of per-branch bf16 dots against column-block
        # slices of the block-diagonal weight, accumulated in f32.  This is the
        # concat of per-branch Linear outputs, laid out contiguously in lanes.
        acc = jnp.dot(xs[0][...], wbs[0][...], preferred_element_type=jnp.float32)
        for i in range(1, num_branches):
            acc = acc + jnp.dot(xs[i][...], wbs[i][...],
                                preferred_element_type=jnp.float32)
        h = _silu(acc + bb_ref[...])

        # Hidden MLP chain; reference applies SiLU after EVERY layer, including
        # the final n_out layer.
        for l in range(num_hidden):
            W = h_refs[2 * l][...]
            b = h_refs[2 * l + 1][...]
            h = _silu(jnp.dot(h.astype(W.dtype), W,
                              preferred_element_type=jnp.float32) + b)

        if pack_output:
            # Only column 0 is real (n_out == 1): transpose each 128-row group
            # (XLU, free slot vs MXU/VPU) so the output is lane-dense.
            rows = []
            for gi in range(g):
                blk = h[gi * LANE:(gi + 1) * LANE, :]   # (128, 128) f32, static slice
                rows.append(blk.T[0:1, :])              # (1, 128): lane j = col 0 of row j
            packed = rows[0] if g == 1 else jnp.concatenate(rows, axis=0)
            out_ref[...] = packed.reshape(out_ref.shape)
        else:
            out_ref[...] = h

    return kernel


# ----------------------------------------------------------------------------
# One-time parameter preparation (hoisted out of the per-call path)
# ----------------------------------------------------------------------------
def prepare_padded_params(branch_params, hidden_params):
    """branch_params / hidden_params: lists of (W [in, out], b [out]) f32.

    Returns (branch_ws, branch_bias, hidden_list):
      branch_ws[i] : bf16 [ceil8(in_i), concat_pad]  (column block of the fused layer)
      branch_bias  : f32  [1, concat_pad]            (fused bias)
      hidden_list  : [(W bf16 [prev_pad, out_pad], b f32 [1, out_pad]), ...]
    """
    out_dims = [W.shape[1] for W, _ in branch_params]
    concat_pad = _ceil_to(sum(out_dims), LANE)

    branch_ws = []
    bb = jnp.zeros((1, concat_pad), jnp.float32)
    c = 0
    for W, b in branch_params:
        k_pad = _ceil_to(W.shape[0], SUBLANE)
        Wi = jnp.zeros((k_pad, concat_pad), jnp.float32)
        Wi = Wi.at[:W.shape[0], c:c + W.shape[1]].set(W)
        bb = bb.at[0, c:c + W.shape[1]].set(b)
        c += W.shape[1]
        branch_ws.append(Wi.astype(jnp.bfloat16))

    hidden_list = []
    prev_pad = concat_pad
    for W, b in hidden_params:
        o_pad = _ceil_to(W.shape[1], LANE)
        Wp = jnp.zeros((prev_pad, o_pad), jnp.float32)
        Wp = Wp.at[:W.shape[0], :W.shape[1]].set(W)
        bp = jnp.zeros((1, o_pad), jnp.float32).at[0, :W.shape[1]].set(b)
        hidden_list.append((Wp.astype(jnp.bfloat16), bp))
        prev_pad = o_pad

    return branch_ws, bb, hidden_list


# ----------------------------------------------------------------------------
# Forward wrapper (jitted; padded params baked in once)
# ----------------------------------------------------------------------------
def make_forward(branch_ws, branch_bias, hidden_list, n_out):
    num_branches = len(branch_ws)
    num_hidden = len(hidden_list)
    out_pad = int(hidden_list[-1][0].shape[1])
    pack_output = (n_out == 1)          # lane-packing is only valid for 1 real column
    param_list = list(branch_ws) + [branch_bias] + [a for wb in hidden_list for a in wb]
    weight_mats = list(branch_ws) + [w for w, _ in hidden_list]
    act_cols = int(branch_bias.shape[1]) + sum(int(b.shape[1]) for _, b in hidden_list)

    @jax.jit
    def forward(atoms, *props_2d):
        branch_inputs = (atoms,) + tuple(props_2d)
        assert len(branch_inputs) == num_branches
        N = atoms.shape[0]
        tm = _choose_tm(N)
        n_pad = _ceil_to(N, tm)
        grid_n = n_pad // tm
        g = tm // LANE

        # Branch inputs stay separate (no packed HBM slab).  Pad rows to the grid
        # and features to the 8-aligned weight K; cast to bf16 (MXU operand only).
        xs = []
        for x, w in zip(branch_inputs, branch_ws):
            k_pad = int(w.shape[0])
            xb = x.astype(jnp.bfloat16)
            xs.append(jnp.pad(xb, ((0, n_pad - N), (0, k_pad - xb.shape[1]))))

        in_specs = [pl.BlockSpec((tm, int(x.shape[1])), lambda i: (i, 0)) for x in xs]
        in_specs += [pl.BlockSpec(p.shape, lambda i: (0, 0)) for p in param_list]

        if pack_output:
            out_shape = jax.ShapeDtypeStruct((grid_n, g, LANE), jnp.float32)
            out_specs = pl.BlockSpec((1, g, LANE), lambda i: (i, 0, 0))
            out_bytes = grid_n * g * LANE * 4
        else:
            out_shape = jax.ShapeDtypeStruct((n_pad, out_pad), jnp.float32)
            out_specs = pl.BlockSpec((tm, out_pad), lambda i: (i, 0))
            out_bytes = n_pad * out_pad * 4

        cost = pl.CostEstimate(
            flops=int(2 * n_pad * sum(int(w.shape[0]) * int(w.shape[1])
                                      for w in weight_mats)),
            transcendentals=int(n_pad * act_cols),
            bytes_accessed=int(sum(x.shape[0] * x.shape[1] * 2 for x in xs)
                               + sum(int(p.size) * p.dtype.itemsize for p in param_list)
                               + out_bytes),
        )

        kernel = _make_kernel(num_branches, num_hidden, tm, pack_output)
        out = pl.pallas_call(
            kernel,
            out_shape=out_shape,
            grid=(grid_n,),
            in_specs=in_specs,
            out_specs=out_specs,
            compiler_params=pltpu.CompilerParams(
                dimension_semantics=("parallel",),
                allow_input_fusion=[True] * len(xs) + [False] * len(param_list)),
            cost_estimate=cost,
        )(*xs, *param_list)

        if pack_output:
            # Padded rows hold silu(bias) garbage; this slice is load-bearing.
            return out.reshape(-1)[:N].reshape(N, 1)
        return out[:N, :n_out]

    return forward


# ----------------------------------------------------------------------------
# Helpers for the demo
# ----------------------------------------------------------------------------
def _init_linear(key, fan_in, fan_out):
    """Deterministic PyTorch-Linear-style init, stored as [in, out] + [out]."""
    k1, k2 = jax.random.split(key)
    bound = 1.0 / math.sqrt(fan_in)
    W = jax.random.uniform(k1, (fan_in, fan_out), jnp.float32, -bound, bound)
    b = jax.random.uniform(k2, (fan_out,), jnp.float32, -bound, bound)
    return W, b


def convert_shape(x, prop_size, elements_per_atom, n_atoms):
    """torch.repeat_interleave glue: data-dependent row replication stays in JAX.
    Note: n_atoms must be a static Python int."""
    if x.ndim == 1:
        reshaped = x.reshape(-1, prop_size)
        return jnp.repeat(reshaped, elements_per_atom, axis=0,
                          total_repeat_length=n_atoms)
    if x.ndim == 2:
        return x
    raise ValueError("Invalid format for property tensor.")


def _ref_forward_f32(atoms, props_2d, branch_params, hidden_params):
    act = jax.nn.silu
    outs = [act(atoms @ branch_params[0][0] + branch_params[0][1])]
    for (W, b), p in zip(branch_params[1:], props_2d):
        outs.append(act(p @ W + b))
    t = jnp.concatenate(outs, axis=-1)
    for W, b in hidden_params:
        t = act(t @ W + b)
    return t


def _ref_forward_bf16(atoms, props_2d, branch_params, hidden_params):
    act = jax.nn.silu

    def mm(x, W):
        return jnp.dot(x.astype(jnp.bfloat16), W.astype(jnp.bfloat16),
                       preferred_element_type=jnp.float32)
    outs = [act(mm(atoms, branch_params[0][0]) + branch_params[0][1])]
    for (W, b), p in zip(branch_params[1:], props_2d):
        outs.append(act(mm(p, W) + b))
    t = jnp.concatenate(outs, axis=-1)
    for W, b in hidden_params:
        t = act(mm(t, W) + b)
    return t


if __name__ == "__main__":
    key = jax.random.PRNGKey(0)

    # Module config (matches AugmentedAtomwiseNN.__init__, hidden_sizes=None).
    atom_in = 16
    additional_props = [8, 4]
    scale_factor = 1.0
    n_out = 1

    H_a = math.ceil(atom_in * scale_factor)
    H_p = [math.ceil(p * scale_factor) for p in additional_props]
    total_in = H_a + sum(H_p)

    # Hidden-layer sizes: halve until previous // 2 <= n_out, then final Linear.
    dims = []
    prev = total_in
    while prev // 2 > n_out:
        nxt = prev // 2
        dims.append((prev, nxt))
        prev = nxt
    dims.append((prev, n_out))

    keys = jax.random.split(key, 2 + len(additional_props) + len(dims))
    ki = iter(keys)
    branch_params = [_init_linear(next(ki), atom_in, H_a)]
    for p, h in zip(additional_props, H_p):
        branch_params.append(_init_linear(next(ki), p, h))
    hidden_params = [_init_linear(next(ki), din, dout) for din, dout in dims]

    # One-time parameter padding / fusion (hoisted out of the per-call path).
    branch_ws, branch_bias, hidden_list = prepare_padded_params(branch_params,
                                                                hidden_params)
    forward = make_forward(branch_ws, branch_bias, hidden_list, n_out)

    # ---------------- test 1: tiny example (2 molecules, [3, 5] atoms) --------
    elements_per_atom = jnp.array([3, 5], dtype=jnp.int32)
    N_atoms = 8
    k_a, k_p0, k_p1 = jax.random.split(next(ki), 3)
    atoms = jax.random.normal(k_a, (N_atoms, atom_in), jnp.float32)
    prop0_flat = jax.random.normal(k_p0, (2 * additional_props[0],), jnp.float32)
    prop1 = jax.random.normal(k_p1, (N_atoms, additional_props[1]), jnp.float32)

    props_2d = [convert_shape(prop0_flat, additional_props[0], elements_per_atom, N_atoms),
                convert_shape(prop1, additional_props[1], elements_per_atom, N_atoms)]

    out = jax.block_until_ready(forward(atoms, *props_2d))
    assert out.shape == (N_atoms, n_out)

    ref_bf16 = _ref_forward_bf16(atoms, props_2d, branch_params, hidden_params)[:, :n_out]
    ref_f32 = _ref_forward_f32(atoms, props_2d, branch_params, hidden_params)[:, :n_out]
    assert jnp.allclose(out, ref_bf16, atol=2e-3, rtol=2e-3), (out, ref_bf16)
    assert jnp.allclose(out, ref_f32, atol=5e-2, rtol=5e-2), (out, ref_f32)

    # ---------------- test 2: larger N -> multi-step parallel grid ------------
    N_big = 1000
    elements_big = jnp.array([400, 600], dtype=jnp.int32)
    k_a2, k_p02, k_p12 = jax.random.split(jax.random.PRNGKey(1), 3)
    atoms_b = jax.random.normal(k_a2, (N_big, atom_in), jnp.float32)
    prop0_b = jax.random.normal(k_p02, (2 * additional_props[0],), jnp.float32)
    prop1_b = jax.random.normal(k_p12, (N_big, additional_props[1]), jnp.float32)
    props_b = [convert_shape(prop0_b, additional_props[0], elements_big, N_big),
               convert_shape(prop1_b, additional_props[1], elements_big, N_big)]

    out_b = jax.block_until_ready(forward(atoms_b, *props_b))
    assert out_b.shape == (N_big, n_out)
    ref_b = _ref_forward_bf16(atoms_b, props_b, branch_params, hidden_params)[:, :n_out]
    assert jnp.allclose(out_b, ref_b, atol=2e-3, rtol=2e-3)

    print("KERNEL_OK")
</pallas_src>

<mosaic_0001>
module attributes {stable_mosaic.version = 11 : i64} {
  func.func @kernel(%arg0: i32, %arg1: memref<128x16xbf16, #tpu.memory_space<vmem>>, %arg2: memref<128x8xbf16, #tpu.memory_space<vmem>>, %arg3: memref<128x8xbf16, #tpu.memory_space<vmem>>, %arg4: memref<16x128xbf16, #tpu.memory_space<vmem>>, %arg5: memref<8x128xbf16, #tpu.memory_space<vmem>>, %arg6: memref<8x128xbf16, #tpu.memory_space<vmem>>, %arg7: memref<1x128xf32, #tpu.memory_space<vmem>>, %arg8: memref<128x128xbf16, #tpu.memory_space<vmem>>, %arg9: memref<1x128xf32, #tpu.memory_space<vmem>>, %arg10: memref<128x128xbf16, #tpu.memory_space<vmem>>, %arg11: memref<1x128xf32, #tpu.memory_space<vmem>>, %arg12: memref<128x128xbf16, #tpu.memory_space<vmem>>, %arg13: memref<1x128xf32, #tpu.memory_space<vmem>>, %arg14: memref<128x128xbf16, #tpu.memory_space<vmem>>, %arg15: memref<1x128xf32, #tpu.memory_space<vmem>>, %arg16: memref<1x1x128xf32, #tpu.memory_space<vmem>>) attributes {dimension_semantics = [#tpu.dimension_semantics<parallel>], iteration_bounds = array<i64: 1>, scalar_prefetch = 0 : i64, scratch_operands = 0 : i64, tpu.core_type = #tpu.core_type<tc>, window_params = [{transform_indices = @transform_0, window_bounds = array<i64: 128, 16>}, {transform_indices = @transform_1, window_bounds = array<i64: 128, 8>}, {transform_indices = @transform_2, window_bounds = array<i64: 128, 8>}, {pipeline_mode = #tpu.pipeline_mode<synchronous>, transform_indices = @transform_3, window_bounds = array<i64: 16, 128>}, {pipeline_mode = #tpu.pipeline_mode<synchronous>, transform_indices = @transform_4, window_bounds = array<i64: 8, 128>}, {pipeline_mode = #tpu.pipeline_mode<synchronous>, transform_indices = @transform_5, window_bounds = array<i64: 8, 128>}, {pipeline_mode = #tpu.pipeline_mode<synchronous>, transform_indices = @transform_6, window_bounds = array<i64: 1, 128>}, {pipeline_mode = #tpu.pipeline_mode<synchronous>, transform_indices = @transform_7, window_bounds = array<i64: 128, 128>}, {pipeline_mode = #tpu.pipeline_mode<synchronous>, transform_indices = @transform_8, window_bounds = array<i64: 1, 128>}, {pipeline_mode = #tpu.pipeline_mode<synchronous>, transform_indices = @transform_9, window_bounds = array<i64: 128, 128>}, {pipeline_mode = #tpu.pipeline_mode<synchronous>, transform_indices = @transform_10, window_bounds = array<i64: 1, 128>}, {pipeline_mode = #tpu.pipeline_mode<synchronous>, transform_indices = @transform_11, window_bounds = array<i64: 128, 128>}, {pipeline_mode = #tpu.pipeline_mode<synchronous>, transform_indices = @transform_12, window_bounds = array<i64: 1, 128>}, {pipeline_mode = #tpu.pipeline_mode<synchronous>, transform_indices = @transform_13, window_bounds = array<i64: 128, 128>}, {pipeline_mode = #tpu.pipeline_mode<synchronous>, transform_indices = @transform_14, window_bounds = array<i64: 1, 128>}, {transform_indices = @transform_15, window_bounds = array<i64: 1, 1, 128>}]} {
    %c0 = arith.constant 0 : index
    %c0_0 = arith.constant 0 : index
    %0 = vector.load %arg1[%c0, %c0_0] : memref<128x16xbf16, #tpu.memory_space<vmem>>, vector<128x16xbf16>
    %c0_1 = arith.constant 0 : index
    %c0_2 = arith.constant 0 : index
    %1 = vector.load %arg4[%c0_1, %c0_2] : memref<16x128xbf16, #tpu.memory_space<vmem>>, vector<16x128xbf16>
    %cst = arith.constant dense<0.000000e+00> : vector<128x128xf32>
    %2 = tpu.matmul %0, %1, %cst {dimension_numbers = #tpu.dot_dimension_numbers<[1], [0], [0], [1], [0, 0, 1, 1], [], []>} : vector<128x16xbf16>, vector<16x128xbf16>, vector<128x128xf32> -> vector<128x128xf32>
    %c0_3 = arith.constant 0 : index
    %c0_4 = arith.constant 0 : index
    %3 = vector.load %arg2[%c0_3, %c0_4] : memref<128x8xbf16, #tpu.memory_space<vmem>>, vector<128x8xbf16>
    %c0_5 = arith.constant 0 : index
    %c0_6 = arith.constant 0 : index
    %4 = vector.load %arg5[%c0_5, %c0_6] : memref<8x128xbf16, #tpu.memory_space<vmem>>, vector<8x128xbf16>
    %cst_7 = arith.constant dense<0.000000e+00> : vector<128x128xf32>
    %5 = tpu.matmul %3, %4, %cst_7 {dimension_numbers = #tpu.dot_dimension_numbers<[1], [0], [0], [1], [0, 0, 1, 1], [], []>} : vector<128x8xbf16>, vector<8x128xbf16>, vector<128x128xf32> -> vector<128x128xf32>
    %6 = arith.addf %2, %5 : vector<128x128xf32>
    %c0_8 = arith.constant 0 : index
    %c0_9 = arith.constant 0 : index
    %7 = vector.load %arg3[%c0_8, %c0_9] : memref<128x8xbf16, #tpu.memory_space<vmem>>, vector<128x8xbf16>
    %c0_10 = arith.constant 0 : index
    %c0_11 = arith.constant 0 : index
    %8 = vector.load %arg6[%c0_10, %c0_11] : memref<8x128xbf16, #tpu.memory_space<vmem>>, vector<8x128xbf16>
    %cst_12 = arith.constant dense<0.000000e+00> : vector<128x128xf32>
    %9 = tpu.matmul %7, %8, %cst_12 {dimension_numbers = #tpu.dot_dimension_numbers<[1], [0], [0], [1], [0, 0, 1, 1], [], []>} : vector<128x8xbf16>, vector<8x128xbf16>, vector<128x128xf32> -> vector<128x128xf32>
    %10 = arith.addf %6, %9 : vector<128x128xf32>
    %c0_13 = arith.constant 0 : index
    %c0_14 = arith.constant 0 : index
    %11 = vector.load %arg7[%c0_13, %c0_14] : memref<1x128xf32, #tpu.memory_space<vmem>>, vector<1x128xf32>
    %12 = vector.broadcast %11 : vector<1x128xf32> to vector<128x128xf32>
    %13 = arith.addf %10, %12 : vector<128x128xf32>
    %cst_15 = arith.constant 5.000000e-01 : f32
    %14 = vector.broadcast %cst_15 : f32 to vector<128x128xf32>
    %15 = arith.mulf %14, %13 : vector<128x128xf32>
    %16 = math.tanh %15 : vector<128x128xf32>
    %cst_16 = arith.constant 5.000000e-01 : f32
    %17 = vector.broadcast %cst_16 : f32 to vector<128x128xf32>
    %18 = arith.mulf %17, %16 : vector<128x128xf32>
    %cst_17 = arith.constant 5.000000e-01 : f32
    %19 = vector.broadcast %cst_17 : f32 to vector<128x128xf32>
    %20 = arith.addf %18, %19 : vector<128x128xf32>
    %21 = arith.mulf %13, %20 : vector<128x128xf32>
    %c0_18 = arith.constant 0 : index
    %c0_19 = arith.constant 0 : index
    %22 = vector.load %arg8[%c0_18, %c0_19] : memref<128x128xbf16, #tpu.memory_space<vmem>>, vector<128x128xbf16>
    %c0_20 = arith.constant 0 : index
    %c0_21 = arith.constant 0 : index
    %23 = vector.load %arg9[%c0_20, %c0_21] : memref<1x128xf32, #tpu.memory_space<vmem>>, vector<1x128xf32>
    %24 = arith.truncf %21 : vector<128x128xf32> to vector<128x128xbf16>
    %cst_22 = arith.constant dense<0.000000e+00> : vector<128x128xf32>
    %25 = tpu.matmul %24, %22, %cst_22 {dimension_numbers = #tpu.dot_dimension_numbers<[1], [0], [0], [1], [0, 0, 1, 1], [], []>} : vector<128x128xbf16>, vector<128x128xbf16>, vector<128x128xf32> -> vector<128x128xf32>
    %26 = vector.broadcast %23 : vector<1x128xf32> to vector<128x128xf32>
    %27 = arith.addf %25, %26 : vector<128x128xf32>
    %cst_23 = arith.constant 5.000000e-01 : f32
    %28 = vector.broadcast %cst_23 : f32 to vector<128x128xf32>
    %29 = arith.mulf %28, %27 : vector<128x128xf32>
    %30 = math.tanh %29 : vector<128x128xf32>
    %cst_24 = arith.constant 5.000000e-01 : f32
    %31 = vector.broadcast %cst_24 : f32 to vector<128x128xf32>
    %32 = arith.mulf %31, %30 : vector<128x128xf32>
    %cst_25 = arith.constant 5.000000e-01 : f32
    %33 = vector.broadcast %cst_25 : f32 to vector<128x128xf32>
    %34 = arith.addf %32, %33 : vector<128x128xf32>
    %35 = arith.mulf %27, %34 : vector<128x128xf32>
    %c0_26 = arith.constant 0 : index
    %c0_27 = arith.constant 0 : index
    %36 = vector.load %arg10[%c0_26, %c0_27] : memref<128x128xbf16, #tpu.memory_space<vmem>>, vector<128x128xbf16>
    %c0_28 = arith.constant 0 : index
    %c0_29 = arith.constant 0 : index
    %37 = vector.load %arg11[%c0_28, %c0_29] : memref<1x128xf32, #tpu.memory_space<vmem>>, vector<1x128xf32>
    %38 = arith.truncf %35 : vector<128x128xf32> to vector<128x128xbf16>
    %cst_30 = arith.constant dense<0.000000e+00> : vector<128x128xf32>
    %39 = tpu.matmul %38, %36, %cst_30 {dimension_numbers = #tpu.dot_dimension_numbers<[1], [0], [0], [1], [0, 0, 1, 1], [], []>} : vector<128x128xbf16>, vector<128x128xbf16>, vector<128x128xf32> -> vector<128x128xf32>
    %40 = vector.broadcast %37 : vector<1x128xf32> to vector<128x128xf32>
    %41 = arith.addf %39, %40 : vector<128x128xf32>
    %cst_31 = arith.constant 5.000000e-01 : f32
    %42 = vector.broadcast %cst_31 : f32 to vector<128x128xf32>
    %43 = arith.mulf %42, %41 : vector<128x128xf32>
    %44 = math.tanh %43 : vector<128x128xf32>
    %cst_32 = arith.constant 5.000000e-01 : f32
    %45 = vector.broadcast %cst_32 : f32 to vector<128x128xf32>
    %46 = arith.mulf %45, %44 : vector<128x128xf32>
    %cst_33 = arith.constant 5.000000e-01 : f32
    %47 = vector.broadcast %cst_33 : f32 to vector<128x128xf32>
    %48 = arith.addf %46, %47 : vector<128x128xf32>
    %49 = arith.mulf %41, %48 : vector<128x128xf32>
    %c0_34 = arith.constant 0 : index
    %c0_35 = arith.constant 0 : index
    %50 = vector.load %arg12[%c0_34, %c0_35] : memref<128x128xbf16, #tpu.memory_space<vmem>>, vector<128x128xbf16>
    %c0_36 = arith.constant 0 : index
    %c0_37 = arith.constant 0 : index
    %51 = vector.load %arg13[%c0_36, %c0_37] : memref<1x128xf32, #tpu.memory_space<vmem>>, vector<1x128xf32>
    %52 = arith.truncf %49 : vector<128x128xf32> to vector<128x128xbf16>
    %cst_38 = arith.constant dense<0.000000e+00> : vector<128x128xf32>
    %53 = tpu.matmul %52, %50, %cst_38 {dimension_numbers = #tpu.dot_dimension_numbers<[1], [0], [0], [1], [0, 0, 1, 1], [], []>} : vector<128x128xbf16>, vector<128x128xbf16>, vector<128x128xf32> -> vector<128x128xf32>
    %54 = vector.broadcast %51 : vector<1x128xf32> to vector<128x128xf32>
    %55 = arith.addf %53, %54 : vector<128x128xf32>
    %cst_39 = arith.constant 5.000000e-01 : f32
    %56 = vector.broadcast %cst_39 : f32 to vector<128x128xf32>
    %57 = arith.mulf %56, %55 : vector<128x128xf32>
    %58 = math.tanh %57 : vector<128x128xf32>
    %cst_40 = arith.constant 5.000000e-01 : f32
    %59 = vector.broadcast %cst_40 : f32 to vector<128x128xf32>
    %60 = arith.mulf %59, %58 : vector<128x128xf32>
    %cst_41 = arith.constant 5.000000e-01 : f32
    %61 = vector.broadcast %cst_41 : f32 to vector<128x128xf32>
    %62 = arith.addf %60, %61 : vector<128x128xf32>
    %63 = arith.mulf %55, %62 : vector<128x128xf32>
    %c0_42 = arith.constant 0 : index
    %c0_43 = arith.constant 0 : index
    %64 = vector.load %arg14[%c0_42, %c0_43] : memref<128x128xbf16, #tpu.memory_space<vmem>>, vector<128x128xbf16>
    %c0_44 = arith.constant 0 : index
    %c0_45 = arith.constant 0 : index
    %65 = vector.load %arg15[%c0_44, %c0_45] : memref<1x128xf32, #tpu.memory_space<vmem>>, vector<1x128xf32>
    %66 = arith.truncf %63 : vector<128x128xf32> to vector<128x128xbf16>
    %cst_46 = arith.constant dense<0.000000e+00> : vector<128x128xf32>
    %67 = tpu.matmul %66, %64, %cst_46 {dimension_numbers = #tpu.dot_dimension_numbers<[1], [0], [0], [1], [0, 0, 1, 1], [], []>} : vector<128x128xbf16>, vector<128x128xbf16>, vector<128x128xf32> -> vector<128x128xf32>
    %68 = vector.broadcast %65 : vector<1x128xf32> to vector<128x128xf32>
    %69 = arith.addf %67, %68 : vector<128x128xf32>
    %cst_47 = arith.constant 5.000000e-01 : f32
    %70 = vector.broadcast %cst_47 : f32 to vector<128x128xf32>
    %71 = arith.mulf %70, %69 : vector<128x128xf32>
    %72 = math.tanh %71 : vector<128x128xf32>
    %cst_48 = arith.constant 5.000000e-01 : f32
    %73 = vector.broadcast %cst_48 : f32 to vector<128x128xf32>
    %74 = arith.mulf %73, %72 : vector<128x128xf32>
    %cst_49 = arith.constant 5.000000e-01 : f32
    %75 = vector.broadcast %cst_49 : f32 to vector<128x128xf32>
    %76 = arith.addf %74, %75 : vector<128x128xf32>
    %77 = arith.mulf %69, %76 : vector<128x128xf32>
    %78 = tpu.transpose %77, [1, 0] : vector<128x128xf32> -> vector<128x128xf32>
    %79 = vector.extract_strided_slice %78 {offsets = [0, 0], sizes = [1, 128], strides = [1, 1]} : vector<128x128xf32> to vector<1x128xf32>
    %80 = vector.shape_cast %79 : vector<1x128xf32> to vector<1x1x128xf32>
    %c0_50 = arith.constant 0 : index
    %c0_51 = arith.constant 0 : index
    %c0_52 = arith.constant 0 : index
    %81 = vector.load %arg16[%c0_50, %c0_51, %c0_52] : memref<1x1x128xf32, #tpu.memory_space<vmem>>, vector<1x1x128xf32>
    tpu.vector_store %arg16[%c0_50, %c0_51, %c0_52], %80 {strides = array<i32>} : memref<1x1x128xf32, #tpu.memory_space<vmem>>, vector<1x1x128xf32>,
    return
  }
  func.func @transform_0(%arg0: i32) -> (i32, i32) {
    %c0_i32 = arith.constant 0 : i32
    %c0_i32_0 = arith.constant 0 : i32
    return %arg0, %c0_i32 : i32, i32
  }
  func.func @transform_1(%arg0: i32) -> (i32, i32) {
    %c0_i32 = arith.constant 0 : i32
    %c0_i32_0 = arith.constant 0 : i32
    return %arg0, %c0_i32 : i32, i32
  }
  func.func @transform_2(%arg0: i32) -> (i32, i32) {
    %c0_i32 = arith.constant 0 : i32
    %c0_i32_0 = arith.constant 0 : i32
    return %arg0, %c0_i32 : i32, i32
  }
  func.func @transform_3(%arg0: i32) -> (i32, i32) {
    %c0_i32 = arith.constant 0 : i32
    %c0_i32_0 = arith.constant 0 : i32
    %c0_i32_1 = arith.constant 0 : i32
    return %c0_i32, %c0_i32_0 : i32, i32
  }
  func.func @transform_4(%arg0: i32) -> (i32, i32) {
    %c0_i32 = arith.constant 0 : i32
    %c0_i32_0 = arith.constant 0 : i32
    %c0_i32_1 = arith.constant 0 : i32
    return %c0_i32, %c0_i32_0 : i32, i32
  }
  func.func @transform_5(%arg0: i32) -> (i32, i32) {
    %c0_i32 = arith.constant 0 : i32
    %c0_i32_0 = arith.constant 0 : i32
    %c0_i32_1 = arith.constant 0 : i32
    return %c0_i32, %c0_i32_0 : i32, i32
  }
  func.func @transform_6(%arg0: i32) -> (i32, i32) {
    %c0_i32 = arith.constant 0 : i32
    %c0_i32_0 = arith.constant 0 : i32
    %c0_i32_1 = arith.constant 0 : i32
    return %c0_i32, %c0_i32_0 : i32, i32
  }
  func.func @transform_7(%arg0: i32) -> (i32, i32) {
    %c0_i32 = arith.constant 0 : i32
    %c0_i32_0 = arith.constant 0 : i32
    %c0_i32_1 = arith.constant 0 : i32
    return %c0_i32, %c0_i32_0 : i32, i32
  }
  func.func @transform_8(%arg0: i32) -> (i32, i32) {
    %c0_i32 = arith.constant 0 : i32
    %c0_i32_0 = arith.constant 0 : i32
    %c0_i32_1 = arith.constant 0 : i32
    return %c0_i32, %c0_i32_0 : i32, i32
  }
  func.func @transform_9(%arg0: i32) -> (i32, i32) {
    %c0_i32 = arith.constant 0 : i32
    %c0_i32_0 = arith.constant 0 : i32
    %c0_i32_1 = arith.constant 0 : i32
    return %c0_i32, %c0_i32_0 : i32, i32
  }
  func.func @transform_10(%arg0: i32) -> (i32, i32) {
    %c0_i32 = arith.constant 0 : i32
    %c0_i32_0 = arith.constant 0 : i32
    %c0_i32_1 = arith.constant 0 : i32
    return %c0_i32, %c0_i32_0 : i32, i32
  }
  func.func @transform_11(%arg0: i32) -> (i32, i32) {
    %c0_i32 = arith.constant 0 : i32
    %c0_i32_0 = arith.constant 0 : i32
    %c0_i32_1 = arith.constant 0 : i32
    return %c0_i32, %c0_i32_0 : i32, i32
  }
  func.func @transform_12(%arg0: i32) -> (i32, i32) {
    %c0_i32 = arith.constant 0 : i32
    %c0_i32_0 = arith.constant 0 : i32
    %c0_i32_1 = arith.constant 0 : i32
    return %c0_i32, %c0_i32_0 : i32, i32
  }
  func.func @transform_13(%arg0: i32) -> (i32, i32) {
    %c0_i32 = arith.constant 0 : i32
    %c0_i32_0 = arith.constant 0 : i32
    %c0_i32_1 = arith.constant 0 : i32
    return %c0_i32, %c0_i32_0 : i32, i32
  }
  func.func @transform_14(%arg0: i32) -> (i32, i32) {
    %c0_i32 = arith.constant 0 : i32
    %c0_i32_0 = arith.constant 0 : i32
    %c0_i32_1 = arith.constant 0 : i32
    return %c0_i32, %c0_i32_0 : i32, i32
  }
  func.func @transform_15(%arg0: i32) -> (i32, i32, i32) {
    %c0_i32 = arith.constant 0 : i32
    %c0_i32_0 = arith.constant 0 : i32
    %c0_i32_1 = arith.constant 0 : i32
    return %arg0, %c0_i32, %c0_i32_0 : i32, i32, i32
  }
}

</mosaic_0001>

<llo_original>
// kernel: forward.2
$region0: #{forward.2}
  #allocation0 [shape = 'u32[]', space=smem, size = 0x4, offset = 0x4, fixed_abs, tag = 'smem constant byte address 0x4 - core index']
  #allocation1 [shape = 'u32[144,128]{1,0:T(1,128)}', space=vmem, size = 0x12000, scoped, tag = 'internal scratch']
  #allocation2 [shape = 'u32[2048]{0}', space=vmem, size = 0x2000, scoped, tag = 'scoped memory for forward.2']
  #allocation3 [shape = 'u32[2048]{0}', space=vmem, size = 0x2000, scoped, tag = 'scoped memory for forward.2']
  #allocation4 [shape = 'u32[2048]{0}', space=vmem, size = 0x2000, scoped, tag = 'scoped memory for forward.2']
  #allocation5 [shape = 'u32[2048]{0}', space=vmem, size = 0x2000, scoped, tag = 'scoped memory for forward.2']
  #allocation6 [shape = 'u32[2048]{0}', space=vmem, size = 0x2000, scoped, tag = 'scoped memory for forward.2']
  #allocation7 [shape = 'u32[2048]{0}', space=vmem, size = 0x2000, scoped, tag = 'scoped memory for forward.2']
  #allocation8 [shape = 'u32[2048]{0}', space=vmem, size = 0x2000, scoped, tag = 'scoped memory for forward.2']
  #allocation9 [shape = 'u32[2048]{0}', space=vmem, size = 0x2000, scoped, tag = 'scoped memory for forward.2']
  #allocation10 [shape = 'u32[2048]{0}', space=vmem, size = 0x2000, scoped, tag = 'scoped memory for forward.2']
  #allocation11 [shape = 'u32[2048]{0}', space=vmem, size = 0x2000, scoped, tag = 'scoped memory for forward.2']
  #allocation12 [shape = 'u32[2048]{0}', space=vmem, size = 0x2000, scoped, tag = 'scoped memory for forward.2']
  #allocation13 [shape = 'u32[2048]{0}', space=vmem, size = 0x2000, scoped, tag = 'scoped memory for forward.2']
  #allocation14 [shape = 'u32[2048]{0}', space=vmem, size = 0x2000, scoped, tag = 'scoped memory for forward.2']
  #allocation15 [shape = 'u32[2048]{0}', space=vmem, size = 0x2000, scoped, tag = 'scoped memory for forward.2']
  #allocation16 [shape = 'u32[2048]{0}', space=vmem, size = 0x2000, scoped, tag = 'scoped memory for forward.2']
  %s0 = inlined_call_operand.vmem [shape: bf16[16,128], index: 0, kind: input, shape index: {}]
  %s1 = inlined_call_operand.vmem [shape: bf16[8,128], index: 1, kind: input, shape index: {}]
  %s2 = inlined_call_operand.vmem [shape: bf16[8,128], index: 2, kind: input, shape index: {}]
  %s3 = inlined_call_operand.vmem [shape: f32[1,128], index: 3, kind: input, shape index: {}]
  %s4 = inlined_call_operand.hbm [shape: bf16[128,128], index: 4, kind: input, shape index: {}]
  %s5 = inlined_call_operand.vmem [shape: f32[1,128], index: 5, kind: input, shape index: {}]
  %s6 = inlined_call_operand.hbm [shape: bf16[128,128], index: 6, kind: input, shape index: {}]
  %s7 = inlined_call_operand.vmem [shape: f32[1,128], index: 7, kind: input, shape index: {}]
  %s8 = inlined_call_operand.hbm [shape: bf16[128,128], index: 8, kind: input, shape index: {}]
  %s9 = inlined_call_operand.vmem [shape: f32[1,128], index: 9, kind: input, shape index: {}]
  %s10 = inlined_call_operand.hbm [shape: bf16[128,128], index: 10, kind: input, shape index: {}]
  %s11 = inlined_call_operand.vmem [shape: f32[1,128], index: 11, kind: input, shape index: {}]
  %s12 = inlined_call_operand.vmem [shape: bf16[8,4], index: 12, kind: input, shape index: {}]
  %s13 = inlined_call_operand.<no memory space> [shape: bf16[], index: 13, kind: input, shape index: {}]
  %s14 = inlined_call_operand.vmem [shape: bf16[8,8], index: 14, kind: input, shape index: {}]
  %s15 = inlined_call_operand.vmem [shape: bf16[8,16], index: 15, kind: input, shape index: {}]
  %s16 = inlined_call_operand.vmem [shape: f32[1,1,128], index: 16, kind: output, shape index: {}]
  %s17 = sld [smem:[#allocation0]]
  $region86: #{forward.2} parent=0
    _
  %s19 = ssub.s32 1, %s17
  %s20 = scalar_select 0, %s19, %s17
  %v21 = vstv %s13
  %v22 = vunpack.i.l.bf16 %v21
  %v24 = vunpack.i.h.bf16 %v21
  %v26 = vstv %s13
  %v27 = vunpack.i.l.bf16 %v26
  %v29 = vunpack.i.h.bf16 %v26
  %v31 = vstv %s13
  %v32 = vunpack.i.l.bf16 %v31
  %v34 = vunpack.i.h.bf16 %v31
  $region1: #{forward.2} parent=0
    #allocation17 [shape = 'u8[32768]{0}', space=vmem, size = 0x8000, scoped, tag = 'input window, operand 7, single buffered']
    #allocation18 [shape = 's32[1]{0}', space=sflag, size = 0x4, scoped, tag = 'scoped memory for forward.2']
    #allocation19 [shape = 'u8[32768]{0}', space=vmem, size = 0x8000, scoped, tag = 'input window, operand 9, single buffered']
    #allocation20 [shape = 's32[1]{0}', space=sflag, size = 0x4, scoped, tag = 'scoped memory for forward.2']
    #allocation21 [shape = 'u8[32768]{0}', space=vmem, size = 0x8000, scoped, tag = 'input window, operand 11, single buffered']
    #allocation22 [shape = 'u8[32768]{0}', space=vmem, size = 0x8000, scoped, tag = 'input window, operand 13, single buffered']
    #allocation23 [shape = 's32[1]{0}', space=sflag, size = 0x4, scoped, tag = 'scoped memory for forward.2']
    #allocation24 [shape = 'u8[32768]{0}', space=vmem, size = 0x8000, dematerialized = true, scoped, tag = 'FusionAdapter Buffer %fusion.3 = bf16[128,16]{1,0:T(8,128)(2,1)} fusion(%param_15.2, %param_13.3), kind=kLoop, calls=%fused_computation.3.clone, metadata={op_name="jit(forward)/jit(_pad)/pad" stack_frame_id=8}']
    #allocation25 [shape = 'u8[32768]{0}', space=vmem, size = 0x8000, dematerialized = true, scoped, tag = 'FusionAdapter Buffer %fusion.2 = bf16[128,8]{1,0:T(8,128)(2,1)} fusion(%param_14.3, %param_13.3), kind=kLoop, calls=%fused_computation.2.clone, metadata={op_name="jit(forward)/jit(_pad)/pad" stack_frame_id=8}']
    #allocation26 [shape = 'u8[32768]{0}', space=vmem, size = 0x8000, dematerialized = true, scoped, tag = 'FusionAdapter Buffer %fusion.1 = bf16[128,8]{1,0:T(8,128)(2,1)} fusion(%param_12.3, %param_13.3), kind=kLoop, calls=%fused_computation.1.clone, metadata={op_name="jit(forward)/jit(_pad)/pad" stack_frame_id=8}']
    %36 = vsyncpa [#allocation18], 0
    %37 = vsyncpa [#allocation20], 0
    %38 = vsyncpa [#allocation23], 0
    // Predicated region
    $region2: #{forward.2} parent=1 // pred_check
      _
    $region3: #{forward.2} parent=1 // pred_check_branch
      %40 = sbr.rel (0) target = $region5
    $region4: #{forward.2} parent=1 // pred_region
      _
    $region5: #{forward.2} parent=1 // pred_fallthru
      _
    // Predicated region
    $region6: #{forward.2} parent=1 // pred_check
      _
    $region7: #{forward.2} parent=1 // pred_check_branch
      %42 = sbr.rel (0) target = $region9
    $region8: #{forward.2} parent=1 // pred_region
      _
    $region9: #{forward.2} parent=1 // pred_fallthru
      _
    // Predicated region
    $region10: #{forward.2} parent=1 // pred_check
      _
    $region11: #{forward.2} parent=1 // pred_check_branch
      %44 = sbr.rel (0) target = $region13
    $region12: #{forward.2} parent=1 // pred_region
      _
    $region13: #{forward.2} parent=1 // pred_fallthru
      _
    // Predicated region
    $region14: #{forward.2} parent=1 // pred_check
      _
    $region15: #{forward.2} parent=1 // pred_check_branch
      %46 = sbr.rel (0) target = $region17
    $region16: #{forward.2} parent=1 // pred_region
      _
    $region17: #{forward.2} parent=1 // pred_fallthru
      _
    // Predicated region
    $region18: #{forward.2} parent=1 // pred_check
      _
    $region19: #{forward.2} parent=1 // pred_check_branch
      %48 = sbr.rel (0) target = $region21
    $region20: #{forward.2} parent=1 // pred_region
      _
    $region21: #{forward.2} parent=1 // pred_fallthru
      _
    // Predicated region
    $region22: #{forward.2} parent=1 // pred_check
      _
    $region23: #{forward.2} parent=1 // pred_check_branch
      %50 = sbr.rel (0) target = $region25
    $region24: #{forward.2} parent=1 // pred_region
      _
    $region25: #{forward.2} parent=1 // pred_fallthru
      _
    // Predicated region
    $region26: #{forward.2} parent=1 // pred_check
      _
    $region27: #{forward.2} parent=1 // pred_check_branch
      %52 = sbr.rel (0) target = $region29
    $region28: #{forward.2} parent=1 // pred_region
      _
    $region29: #{forward.2} parent=1 // pred_fallthru
      _
    // Predicated region
    $region30: #{forward.2} parent=1 // pred_check
      _
    $region31: #{forward.2} parent=1 // pred_check_branch
      %54 = sbr.rel (0) target = $region33
    $region32: #{forward.2} parent=1 // pred_region
      %s56 = ssub.s32 1024, 1024
      %57 = vsyncadd [#allocation18], %s56
      %s58 = sshll.u32 [#allocation17], 4
      %s59 = int_to_ptr.vmem [resolvable:$true] %s58
      %64 = dma.hbm_to_vmem [thread:$0]  %s4, 1024, %s59, [#allocation18], 128, 128, 8
    $region33: #{forward.2} parent=1 // pred_fallthru
      _
    // Predicated region
    $region34: #{forward.2} parent=1 // pred_check
      _
    $region35: #{forward.2} parent=1 // pred_check_branch
      %66 = sbr.rel (0) target = $region37
    $region36: #{forward.2} parent=1 // pred_region
      _
    $region37: #{forward.2} parent=1 // pred_fallthru
      _
    // Predicated region
    $region38: #{forward.2} parent=1 // pred_check
      _
    $region39: #{forward.2} parent=1 // pred_check_branch
      %68 = sbr.rel (0) target = $region41
    $region40: #{forward.2} parent=1 // pred_region
      %s70 = ssub.s32 1024, 1024
      %71 = vsyncadd [#allocation20], %s70
      %s72 = sshll.u32 [#allocation19], 4
      %s73 = int_to_ptr.vmem [resolvable:$true] %s72
      %78 = dma.hbm_to_vmem [thread:$0]  %s6, 1024, %s73, [#allocation20], 128, 128, 8
    $region41: #{forward.2} parent=1 // pred_fallthru
      _
    // Predicated region
    $region42: #{forward.2} parent=1 // pred_check
      _
    $region43: #{forward.2} parent=1 // pred_check_branch
      %80 = sbr.rel (0) target = $region45
    $region44: #{forward.2} parent=1 // pred_region
      _
    $region45: #{forward.2} parent=1 // pred_fallthru
      _
    // Predicated region
    $region46: #{forward.2} parent=1 // pred_check
      _
    $region47: #{forward.2} parent=1 // pred_check_branch
      %82 = sbr.rel (0) target = $region49
    $region48: #{forward.2} parent=1 // pred_region
      %s84 = ssub.s32 1024, 1024
      %85 = vsyncadd [#allocation20], %s84
      %s86 = sshll.u32 [#allocation21], 4
      %s87 = int_to_ptr.vmem [resolvable:$true] %s86
      %92 = dma.hbm_to_vmem [thread:$0]  %s8, 1024, %s87, [#allocation20], 128, 128, 8
    $region49: #{forward.2} parent=1 // pred_fallthru
      _
    // Predicated region
    $region50: #{forward.2} parent=1 // pred_check
      _
    $region51: #{forward.2} parent=1 // pred_check_branch
      %94 = sbr.rel (0) target = $region53
    $region52: #{forward.2} parent=1 // pred_region
      _
    $region53: #{forward.2} parent=1 // pred_fallthru
      _
    // Predicated region
    $region54: #{forward.2} parent=1 // pred_check
      _
    $region55: #{forward.2} parent=1 // pred_check_branch
      %96 = sbr.rel (0) target = $region57
    $region56: #{forward.2} parent=1 // pred_region
      %s98 = ssub.s32 1024, 1024
      %99 = vsyncadd [#allocation23], %s98
      %s100 = sshll.u32 [#allocation22], 4
      %s101 = int_to_ptr.vmem [resolvable:$true] %s100
      %106 = dma.hbm_to_vmem [thread:$0]  %s10, 1024, %s101, [#allocation23], 128, 128, 8
    $region57: #{forward.2} parent=1 // pred_fallthru
      _
    // Predicated region
    $region58: #{forward.2} parent=1 // pred_check
      _
    $region59: #{forward.2} parent=1 // pred_check_branch
      %108 = sbr.rel (0) target = $region61
    $region60: #{forward.2} parent=1 // pred_region
      _
    $region61: #{forward.2} parent=1 // pred_fallthru
      _
    // Predicated region
    $region62: #{forward.2} parent=1 // pred_check
      _
    $region63: #{forward.2} parent=1 // pred_check_branch
      %110 = sbr.rel (0) target = $region65
    $region64: #{forward.2} parent=1 // pred_region
      %111 = dma.done [#allocation18], 1024
    $region65: #{forward.2} parent=1 // pred_fallthru
      _
    // Predicated region
    $region66: #{forward.2} parent=1 // pred_check
      _
    $region67: #{forward.2} parent=1 // pred_check_branch
      %113 = sbr.rel (0) target = $region69
    $region68: #{forward.2} parent=1 // pred_region
      %114 = dma.done [#allocation20], 1024
    $region69: #{forward.2} parent=1 // pred_fallthru
      _
    // Predicated region
    $region70: #{forward.2} parent=1 // pred_check
      _
    $region71: #{forward.2} parent=1 // pred_check_branch
      %116 = sbr.rel (0) target = $region73
    $region72: #{forward.2} parent=1 // pred_region
      %117 = dma.done [#allocation20], 1024
    $region73: #{forward.2} parent=1 // pred_fallthru
      _
    // Predicated region
    $region74: #{forward.2} parent=1 // pred_check
      _
    $region75: #{forward.2} parent=1 // pred_check_branch
      %119 = sbr.rel (0) target = $region77
    $region76: #{forward.2} parent=1 // pred_region
      %120 = dma.done [#allocation23], 1024
    $region77: #{forward.2} parent=1 // pred_fallthru
      _
    %s122 = sor.u32 255, 127
    %s123 = sand.u32 %s122, 85
    %s124 = sshrl.u32 %s123, 1
    %s125 = sor.u32 %s123, %s124
    %s126 = sand.u32 51, %s125
    %s127 = sshrl.u32 %s126, 2
    %s128 = sor.u32 %s126, %s127
    %s129 = sand.u32 15, %s128
    %v130 = vld [vmem:[%s15] sm:%s129]
    %v131 = vunpack.c.l.bf16 %v130
    %v132 = vunpack.c.h.bf16 %v130
    %v133 = vlaneseq
    %v134 = vand.u32 %v133, 127
    %vm136 = vcmp.lt.s32.totalorder %v134, 16
    %v137 = vsel %vm136, %v131, %v22
    %v138 = vpack.c.bf16 0.0, %v137
    %140 = vst [vmem:[#allocation24] sm:$0xf] %v138
    %s141 = scalar_lea.vmem [#allocation24], 4
    %v142 = vpack.c.bf16 0.0, %v22
    %144 = vst [vmem:[%s141] sm:$0xf] %v142
    %s145 = scalar_lea.vmem [#allocation24], 8
    %v146 = vpack.c.bf16 0.0, %v22
    %148 = vst [vmem:[%s145] sm:$0xf] %v146
    %s149 = scalar_lea.vmem [#allocation24], 12
    %v150 = vpack.c.bf16 0.0, %v22
    %152 = vst [vmem:[%s149] sm:$0xf] %v150
    %s153 = scalar_lea.vmem [#allocation24], 16
    %v154 = vpack.c.bf16 0.0, %v22
    %156 = vst [vmem:[%s153] sm:$0xf] %v154
    %s157 = scalar_lea.vmem [#allocation24], 20
    %v158 = vpack.c.bf16 0.0, %v22
    %160 = vst [vmem:[%s157] sm:$0xf] %v158
    %s161 = scalar_lea.vmem [#allocation24], 24
    %v162 = vpack.c.bf16 0.0, %v22
    %164 = vst [vmem:[%s161] sm:$0xf] %v162
    %s165 = scalar_lea.vmem [#allocation24], 28
    %v166 = vpack.c.bf16 0.0, %v22
    %168 = vst [vmem:[%s165] sm:$0xf] %v166
    %s169 = scalar_lea.vmem [#allocation24], 32
    %v170 = vpack.c.bf16 0.0, %v22
    %172 = vst [vmem:[%s169] sm:$0xf] %v170
    %s173 = scalar_lea.vmem [#allocation24], 36
    %v174 = vpack.c.bf16 0.0, %v22
    %176 = vst [vmem:[%s173] sm:$0xf] %v174
    %s177 = scalar_lea.vmem [#allocation24], 40
    %v178 = vpack.c.bf16 0.0, %v22
    %180 = vst [vmem:[%s177] sm:$0xf] %v178
    %s181 = scalar_lea.vmem [#allocation24], 44
    %v182 = vpack.c.bf16 0.0, %v22
    %184 = vst [vmem:[%s181] sm:$0xf] %v182
    %s185 = scalar_lea.vmem [#allocation24], 48
    %v186 = vpack.c.bf16 0.0, %v22
    %188 = vst [vmem:[%s185] sm:$0xf] %v186
    %s189 = scalar_lea.vmem [#allocation24], 52
    %v190 = vpack.c.bf16 0.0, %v22
    %192 = vst [vmem:[%s189] sm:$0xf] %v190
    %s193 = scalar_lea.vmem [#allocation24], 56
    %v194 = vpack.c.bf16 0.0, %v22
    %196 = vst [vmem:[%s193] sm:$0xf] %v194
    %s197 = scalar_lea.vmem [#allocation24], 60
    %v198 = vpack.c.bf16 0.0, %v22
    %200 = vst [vmem:[%s197] sm:$0xf] %v198
    %s202 = sor.u32 255, 127
    %s203 = sand.u32 %s202, 85
    %s204 = sshrl.u32 %s203, 1
    %s205 = sor.u32 %s203, %s204
    %s206 = sand.u32 51, %s205
    %s207 = sshrl.u32 %s206, 2
    %s208 = sor.u32 %s206, %s207
    %s209 = sand.u32 15, %s208
    %v210 = vld [vmem:[%s14] sm:%s209]
    %v211 = vunpack.c.l.bf16 %v210
    %v212 = vunpack.c.h.bf16 %v210
    %v213 = vlaneseq
    %v214 = vand.u32 %v213, 127
    %vm216 = vcmp.lt.s32.totalorder %v214, 8
    %v217 = vsel %vm216, %v211, %v27
    %v218 = vpack.c.bf16 0.0, %v217
    %220 = vst [vmem:[#allocation25] sm:$0xf] %v218
    %s221 = scalar_lea.vmem [#allocation25], 4
    %v222 = vpack.c.bf16 0.0, %v27
    %224 = vst [vmem:[%s221] sm:$0xf] %v222
    %s225 = scalar_lea.vmem [#allocation25], 8
    %v226 = vpack.c.bf16 0.0, %v27
    %228 = vst [vmem:[%s225] sm:$0xf] %v226
    %s229 = scalar_lea.vmem [#allocation25], 12
    %v230 = vpack.c.bf16 0.0, %v27
    %232 = vst [vmem:[%s229] sm:$0xf] %v230
    %s233 = scalar_lea.vmem [#allocation25], 16
    %v234 = vpack.c.bf16 0.0, %v27
    %236 = vst [vmem:[%s233] sm:$0xf] %v234
    %s237 = scalar_lea.vmem [#allocation25], 20
    %v238 = vpack.c.bf16 0.0, %v27
    %240 = vst [vmem:[%s237] sm:$0xf] %v238
    %s241 = scalar_lea.vmem [#allocation25], 24
    %v242 = vpack.c.bf16 0.0, %v27
    %244 = vst [vmem:[%s241] sm:$0xf] %v242
    %s245 = scalar_lea.vmem [#allocation25], 28
    %v246 = vpack.c.bf16 0.0, %v27
    %248 = vst [vmem:[%s245] sm:$0xf] %v246
    %s249 = scalar_lea.vmem [#allocation25], 32
    %v250 = vpack.c.bf16 0.0, %v27
    %252 = vst [vmem:[%s249] sm:$0xf] %v250
    %s253 = scalar_lea.vmem [#allocation25], 36
    %v254 = vpack.c.bf16 0.0, %v27
    %256 = vst [vmem:[%s253] sm:$0xf] %v254
    %s257 = scalar_lea.vmem [#allocation25], 40
    %v258 = vpack.c.bf16 0.0, %v27
    %260 = vst [vmem:[%s257] sm:$0xf] %v258
    %s261 = scalar_lea.vmem [#allocation25], 44
    %v262 = vpack.c.bf16 0.0, %v27
    %264 = vst [vmem:[%s261] sm:$0xf] %v262
    %s265 = scalar_lea.vmem [#allocation25], 48
    %v266 = vpack.c.bf16 0.0, %v27
    %268 = vst [vmem:[%s265] sm:$0xf] %v266
    %s269 = scalar_lea.vmem [#allocation25], 52
    %v270 = vpack.c.bf16 0.0, %v27
    %272 = vst [vmem:[%s269] sm:$0xf] %v270
    %s273 = scalar_lea.vmem [#allocation25], 56
    %v274 = vpack.c.bf16 0.0, %v27
    %276 = vst [vmem:[%s273] sm:$0xf] %v274
    %s277 = scalar_lea.vmem [#allocation25], 60
    %v278 = vpack.c.bf16 0.0, %v27
    %280 = vst [vmem:[%s277] sm:$0xf] %v278
    %s282 = sor.u32 255, 127
    %s283 = sand.u32 %s282, 85
    %s284 = sshrl.u32 %s283, 1
    %s285 = sor.u32 %s283, %s284
    %s286 = sand.u32 51, %s285
    %s287 = sshrl.u32 %s286, 2
    %s288 = sor.u32 %s286, %s287
    %s289 = sand.u32 15, %s288
    %v290 = vld [vmem:[%s12] sm:%s289]
    %v291 = vunpack.c.l.bf16 %v290
    %v292 = vunpack.c.h.bf16 %v290
    %v293 = vlaneseq
    %v294 = vand.u32 %v293, 127
    %vm296 = vcmp.lt.s32.totalorder %v294, 4
    %v297 = vsel %vm296, %v291, %v32
    %v298 = vpack.c.bf16 0.0, %v297
    %300 = vst [vmem:[#allocation26] sm:$0xf] %v298
    %s301 = scalar_lea.vmem [#allocation26], 4
    %v302 = vpack.c.bf16 0.0, %v32
    %304 = vst [vmem:[%s301] sm:$0xf] %v302
    %s305 = scalar_lea.vmem [#allocation26], 8
    %v306 = vpack.c.bf16 0.0, %v32
    %308 = vst [vmem:[%s305] sm:$0xf] %v306
    %s309 = scalar_lea.vmem [#allocation26], 12
    %v310 = vpack.c.bf16 0.0, %v32
    %312 = vst [vmem:[%s309] sm:$0xf] %v310
    %s313 = scalar_lea.vmem [#allocation26], 16
    %v314 = vpack.c.bf16 0.0, %v32
    %316 = vst [vmem:[%s313] sm:$0xf] %v314
    %s317 = scalar_lea.vmem [#allocation26], 20
    %v318 = vpack.c.bf16 0.0, %v32
    %320 = vst [vmem:[%s317] sm:$0xf] %v318
    %s321 = scalar_lea.vmem [#allocation26], 24
    %v322 = vpack.c.bf16 0.0, %v32
    %324 = vst [vmem:[%s321] sm:$0xf] %v322
    %s325 = scalar_lea.vmem [#allocation26], 28
    %v326 = vpack.c.bf16 0.0, %v32
    %328 = vst [vmem:[%s325] sm:$0xf] %v326
    %s329 = scalar_lea.vmem [#allocation26], 32
    %v330 = vpack.c.bf16 0.0, %v32
    %332 = vst [vmem:[%s329] sm:$0xf] %v330
    %s333 = scalar_lea.vmem [#allocation26], 36
    %v334 = vpack.c.bf16 0.0, %v32
    %336 = vst [vmem:[%s333] sm:$0xf] %v334
    %s337 = scalar_lea.vmem [#allocation26], 40
    %v338 = vpack.c.bf16 0.0, %v32
    %340 = vst [vmem:[%s337] sm:$0xf] %v338
    %s341 = scalar_lea.vmem [#allocation26], 44
    %v342 = vpack.c.bf16 0.0, %v32
    %344 = vst [vmem:[%s341] sm:$0xf] %v342
    %s345 = scalar_lea.vmem [#allocation26], 48
    %v346 = vpack.c.bf16 0.0, %v32
    %348 = vst [vmem:[%s345] sm:$0xf] %v346
    %s349 = scalar_lea.vmem [#allocation26], 52
    %v350 = vpack.c.bf16 0.0, %v32
    %352 = vst [vmem:[%s349] sm:$0xf] %v350
    %s353 = scalar_lea.vmem [#allocation26], 56
    %v354 = vpack.c.bf16 0.0, %v32
    %356 = vst [vmem:[%s353] sm:$0xf] %v354
    %s357 = scalar_lea.vmem [#allocation26], 60
    %v358 = vpack.c.bf16 0.0, %v32
    %360 = vst [vmem:[%s357] sm:$0xf] %v358
    %v362 = vld [vmem:[#allocation24] sm:$0xf]
    %v363 = vld [vmem:[#allocation24 + $0x4] sm:$0xf]
    %v364 = vld [vmem:[#allocation24 + $0x8] sm:$0xf]
    %v365 = vld [vmem:[#allocation24 + $0xc] sm:$0xf]
    %v366 = vld [vmem:[#allocation24 + $0x10] sm:$0xf]
    %v367 = vld [vmem:[#allocation24 + $0x14] sm:$0xf]
    %v368 = vld [vmem:[#allocation24 + $0x18] sm:$0xf]
    %v369 = vld [vmem:[#allocation24 + $0x1c] sm:$0xf]
    %v370 = vld [vmem:[#allocation24 + $0x20] sm:$0xf]
    %v371 = vld [vmem:[#allocation24 + $0x24] sm:$0xf]
    %v372 = vld [vmem:[#allocation24 + $0x28] sm:$0xf]
    %v373 = vld [vmem:[#allocation24 + $0x2c] sm:$0xf]
    %v374 = vld [vmem:[#allocation24 + $0x30] sm:$0xf]
    %v375 = vld [vmem:[#allocation24 + $0x34] sm:$0xf]
    %v376 = vld [vmem:[#allocation24 + $0x38] sm:$0xf]
    %v377 = vld [vmem:[#allocation24 + $0x3c] sm:$0xf]
    %v378 = vld [vmem:[%s0] sm:$0xff]
    %v379 = vld [vmem:[#allocation25] sm:$0xf]
    %v380 = vld [vmem:[#allocation25 + $0x4] sm:$0xf]
    %v381 = vld [vmem:[#allocation25 + $0x8] sm:$0xf]
    %v382 = vld [vmem:[#allocation25 + $0xc] sm:$0xf]
    %v383 = vld [vmem:[#allocation25 + $0x10] sm:$0xf]
    %v384 = vld [vmem:[#allocation25 + $0x14] sm:$0xf]
    %v385 = vld [vmem:[#allocation25 + $0x18] sm:$0xf]
    %v386 = vld [vmem:[#allocation25 + $0x1c] sm:$0xf]
    %v387 = vld [vmem:[#allocation25 + $0x20] sm:$0xf]
    %v388 = vld [vmem:[#allocation25 + $0x24] sm:$0xf]
    %v389 = vld [vmem:[#allocation25 + $0x28] sm:$0xf]
    %v390 = vld [vmem:[#allocation25 + $0x2c] sm:$0xf]
    %v391 = vld [vmem:[#allocation25 + $0x30] sm:$0xf]
    %v392 = vld [vmem:[#allocation25 + $0x34] sm:$0xf]
    %v393 = vld [vmem:[#allocation25 + $0x38] sm:$0xf]
    %v394 = vld [vmem:[#allocation25 + $0x3c] sm:$0xf]
    %v395 = vld [vmem:[%s1] sm:$0xf]
    %v412 = vunpack.c.l.b16 %v379
    %v413 = vunpack.c.l.b16 %v380
    %v414 = vunpack.c.l.b16 %v381
    %v415 = vunpack.c.l.b16 %v382
    %v416 = vunpack.c.l.b16 %v383
    %v417 = vunpack.c.l.b16 %v384
    %v418 = vunpack.c.l.b16 %v385
    %v419 = vunpack.c.l.b16 %v386
    %v420 = vunpack.c.l.b16 %v387
    %v421 = vunpack.c.l.b16 %v388
    %v422 = vunpack.c.l.b16 %v389
    %v423 = vunpack.c.l.b16 %v390
    %v424 = vunpack.c.l.b16 %v391
    %v425 = vunpack.c.l.b16 %v392
    %v426 = vunpack.c.l.b16 %v393
    %v427 = vunpack.c.l.b16 %v394
    %v428 = vpack.c.b16 %v413, %v412
    %v429 = vpack.c.b16 %v415, %v414
    %v430 = vpack.c.b16 %v417, %v416
    %v431 = vpack.c.b16 %v419, %v418
    %v432 = vpack.c.b16 %v421, %v420
    %v433 = vpack.c.b16 %v423, %v422
    %v434 = vpack.c.b16 %v425, %v424
    %v435 = vpack.c.b16 %v427, %v426
    %vm436 = vcmask 64512
    %v438 = vsel %vm436, %v428, 0
    %v441 = vsel %vm436, %v429, 0
    %v444 = vsel %vm436, %v430, 0
    %v447 = vsel %vm436, %v431, 0
    %v450 = vsel %vm436, %v432, 0
    %v453 = vsel %vm436, %v433, 0
    %v456 = vsel %vm436, %v434, 0
    %v459 = vsel %vm436, %v435, 0
    %vm461 = vcmask 1043456
    %v463 = vsel %vm461, %v395, 0
    %465 = vmatprep.subr.bf16.mxu0 0
    %466 = vmatpush1.bf16.msra.mxu0 %v463
    %467 = vmatprep.subr.bf16.mxu0 0
    %468 = vmatpush1.bf16.msra.mxu0 0
    %469 = vmatprep.subr.bf16.mxu0 0
    %470 = vmatpush1.bf16.msra.mxu0 0
    %471 = vmatprep.subr.bf16.mxu0 0
    %472 = vmatpush1.bf16.msra.mxu0 0
    %473 = vmatprep.subr.bf16.mxu0 0
    %474 = vmatpush1.bf16.msra.mxu0 0
    %475 = vmatprep.subr.bf16.mxu0 0
    %476 = vmatpush1.bf16.msra.mxu0 0
    %477 = vmatprep.subr.bf16.mxu0 0
    %478 = vmatpush1.bf16.msra.mxu0 0
    %479 = vmatprep.subr.bf16.mxu0 0
    %480 = vmatpush1.bf16.msra.mxu0 0
    %481 = vmatprep.subr.bf16.mxu0 0
    %482 = vmatpush1.bf16.msra.mxu0 0
    %483 = vmatprep.subr.bf16.mxu0 0
    %484 = vmatpush1.bf16.msra.mxu0 0
    %485 = vmatprep.subr.bf16.mxu0 0
    %486 = vmatpush1.bf16.msra.mxu0 0
    %487 = vmatprep.subr.bf16.mxu0 0
    %488 = vmatpush1.bf16.msra.mxu0 0
    %489 = vmatprep.subr.bf16.mxu0 0
    %490 = vmatpush1.bf16.msra.mxu0 0
    %491 = vmatprep.subr.bf16.mxu0 0
    %492 = vmatpush1.bf16.msra.mxu0 0
    %493 = vmatprep.subr.bf16.mxu0 0
    %494 = vmatpush1.bf16.msra.mxu0 0
    %495 = vmatprep.subr.bf16.mxu0 0
    %496 = vmatpush1.bf16.msra.mxu0 0
    %497 = vmatprep.mubr.bf16.mxu0 0
    %498 = vmatmul.mubr.bf16.gmra.mrb[0].mxu0 %v438
    %v499 = vpop.f32.mrb[0].mxu0
    %v500 = vadd.f32 0.0, %v499
    %v501 = vpop.f32.mrb[0].mxu0
    %v502 = vpop.f32.mrb[0].mxu0
    %v503 = vadd.f32 0.0, %v502
    %v504 = vpop.f32.mrb[0].mxu0
    %505 = vmatprep.mubr.bf16.mxu0 0
    %506 = vmatmul.mubr.bf16.gmra.mrb[0].mxu0 %v441
    %v507 = vpop.f32.mrb[0].mxu0
    %v508 = vadd.f32 0.0, %v507
    %v509 = vpop.f32.mrb[0].mxu0
    %v510 = vpop.f32.mrb[0].mxu0
    %v511 = vadd.f32 0.0, %v510
    %v512 = vpop.f32.mrb[0].mxu0
    %513 = vmatprep.mubr.bf16.mxu0 0
    %514 = vmatmul.mubr.bf16.gmra.mrb[0].mxu0 %v444
    %v515 = vpop.f32.mrb[0].mxu0
    %v516 = vadd.f32 0.0, %v515
    %v517 = vpop.f32.mrb[0].mxu0
    %v518 = vpop.f32.mrb[0].mxu0
    %v519 = vadd.f32 0.0, %v518
    %v520 = vpop.f32.mrb[0].mxu0
    %521 = vmatprep.mubr.bf16.mxu0 0
    %522 = vmatmul.mubr.bf16.gmra.mrb[0].mxu0 %v447
    %v523 = vpop.f32.mrb[0].mxu0
    %v524 = vadd.f32 0.0, %v523
    %v525 = vpop.f32.mrb[0].mxu0
    %v526 = vpop.f32.mrb[0].mxu0
    %v527 = vadd.f32 0.0, %v526
    %v528 = vpop.f32.mrb[0].mxu0
    %529 = vmatprep.mubr.bf16.mxu0 0
    %530 = vmatmul.mubr.bf16.gmra.mrb[0].mxu0 %v450
    %v531 = vpop.f32.mrb[0].mxu0
    %v532 = vadd.f32 0.0, %v531
    %v533 = vpop.f32.mrb[0].mxu0
    %v534 = vpop.f32.mrb[0].mxu0
    %v535 = vadd.f32 0.0, %v534
    %v536 = vpop.f32.mrb[0].mxu0
    %537 = vmatprep.mubr.bf16.mxu0 0
    %538 = vmatmul.mubr.bf16.gmra.mrb[0].mxu0 %v453
    %v539 = vpop.f32.mrb[0].mxu0
    %v540 = vadd.f32 0.0, %v539
    %v541 = vpop.f32.mrb[0].mxu0
    %v542 = vpop.f32.mrb[0].mxu0
    %v543 = vadd.f32 0.0, %v542
    %v544 = vpop.f32.mrb[0].mxu0
    %545 = vmatprep.mubr.bf16.mxu0 0
    %546 = vmatmul.mubr.bf16.gmra.mrb[0].mxu0 %v456
    %v547 = vpop.f32.mrb[0].mxu0
    %v548 = vadd.f32 0.0, %v547
    %v549 = vpop.f32.mrb[0].mxu0
    %v550 = vpop.f32.mrb[0].mxu0
    %v551 = vadd.f32 0.0, %v550
    %v552 = vpop.f32.mrb[0].mxu0
    %553 = vmatprep.mubr.bf16.mxu0 0
    %554 = vmatmul.mubr.bf16.gmra.mrb[0].mxu0 %v459
    %v555 = vpop.f32.mrb[0].mxu0
    %v556 = vadd.f32 0.0, %v555
    %v557 = vpop.f32.mrb[0].mxu0
    %v558 = vpop.f32.mrb[0].mxu0
    %v559 = vadd.f32 0.0, %v558
    %v560 = vpop.f32.mrb[0].mxu0
    %561 = vdwg.mxu0
    %v578 = vunpack.c.l.b16 %v362
    %v579 = vunpack.c.l.b16 %v363
    %v580 = vunpack.c.l.b16 %v364
    %v581 = vunpack.c.l.b16 %v365
    %v582 = vunpack.c.l.b16 %v366
    %v583 = vunpack.c.l.b16 %v367
    %v584 = vunpack.c.l.b16 %v368
    %v585 = vunpack.c.l.b16 %v369
    %v586 = vunpack.c.l.b16 %v370
    %v587 = vunpack.c.l.b16 %v371
    %v588 = vunpack.c.l.b16 %v372
    %v589 = vunpack.c.l.b16 %v373
    %v590 = vunpack.c.l.b16 %v374
    %v591 = vunpack.c.l.b16 %v375
    %v592 = vunpack.c.l.b16 %v376
    %v593 = vunpack.c.l.b16 %v377
    %v594 = vpack.c.b16 %v579, %v578
    %v595 = vpack.c.b16 %v581, %v580
    %v596 = vpack.c.b16 %v583, %v582
    %v597 = vpack.c.b16 %v585, %v584
    %v598 = vpack.c.b16 %v587, %v586
    %v599 = vpack.c.b16 %v589, %v588
    %v600 = vpack.c.b16 %v591, %v590
    %v601 = vpack.c.b16 %v593, %v592
    %vm602 = vcmask 130048
    %v604 = vsel %vm602, %v594, 0
    %v607 = vsel %vm602, %v595, 0
    %v610 = vsel %vm602, %v596, 0
    %v613 = vsel %vm602, %v597, 0
    %v616 = vsel %vm602, %v598, 0
    %v619 = vsel %vm602, %v599, 0
    %v622 = vsel %vm602, %v600, 0
    %v625 = vsel %vm602, %v601, 0
    %627 = vmatprep.subr.bf16.mxu0 0
    %628 = vmatpush1.bf16.msra.mxu0 %v378
    %629 = vmatprep.subr.bf16.mxu0 0
    %630 = vmatpush1.bf16.msra.mxu0 0
    %631 = vmatprep.subr.bf16.mxu0 0
    %632 = vmatpush1.bf16.msra.mxu0 0
    %633 = vmatprep.subr.bf16.mxu0 0
    %634 = vmatpush1.bf16.msra.mxu0 0
    %635 = vmatprep.subr.bf16.mxu0 0
    %636 = vmatpush1.bf16.msra.mxu0 0
    %637 = vmatprep.subr.bf16.mxu0 0
    %638 = vmatpush1.bf16.msra.mxu0 0
    %639 = vmatprep.subr.bf16.mxu0 0
    %640 = vmatpush1.bf16.msra.mxu0 0
    %641 = vmatprep.subr.bf16.mxu0 0
    %642 = vmatpush1.bf16.msra.mxu0 0
    %643 = vmatprep.subr.bf16.mxu0 0
    %644 = vmatpush1.bf16.msra.mxu0 0
    %645 = vmatprep.subr.bf16.mxu0 0
    %646 = vmatpush1.bf16.msra.mxu0 0
    %647 = vmatprep.subr.bf16.mxu0 0
    %648 = vmatpush1.bf16.msra.mxu0 0
    %649 = vmatprep.subr.bf16.mxu0 0
    %650 = vmatpush1.bf16.msra.mxu0 0
    %651 = vmatprep.subr.bf16.mxu0 0
    %652 = vmatpush1.bf16.msra.mxu0 0
    %653 = vmatprep.subr.bf16.mxu0 0
    %654 = vmatpush1.bf16.msra.mxu0 0
    %655 = vmatprep.subr.bf16.mxu0 0
    %656 = vmatpush1.bf16.msra.mxu0 0
    %657 = vmatprep.subr.bf16.mxu0 0
    %658 = vmatpush1.bf16.msra.mxu0 0
    %659 = vmatprep.mubr.bf16.mxu0 0
    %660 = vmatmul.mubr.bf16.gmra.mrb[0].mxu0 %v604
    %v661 = vpop.f32.mrb[0].mxu0
    %v662 = vadd.f32 %v500, %v661
    %v663 = vpop.f32.mrb[0].mxu0
    %v664 = vpop.f32.mrb[0].mxu0
    %v665 = vadd.f32 %v503, %v664
    %v666 = vpop.f32.mrb[0].mxu0
    %667 = vmatprep.mubr.bf16.mxu0 0
    %668 = vmatmul.mubr.bf16.gmra.mrb[0].mxu0 %v607
    %v669 = vpop.f32.mrb[0].mxu0
    %v670 = vadd.f32 %v508, %v669
    %v671 = vpop.f32.mrb[0].mxu0
    %v672 = vpop.f32.mrb[0].mxu0
    %v673 = vadd.f32 %v511, %v672
    %v674 = vpop.f32.mrb[0].mxu0
    %675 = vmatprep.mubr.bf16.mxu0 0
    %676 = vmatmul.mubr.bf16.gmra.mrb[0].mxu0 %v610
    %v677 = vpop.f32.mrb[0].mxu0
    %v678 = vadd.f32 %v516, %v677
    %v679 = vpop.f32.mrb[0].mxu0
    %v680 = vpop.f32.mrb[0].mxu0
    %v681 = vadd.f32 %v519, %v680
    %v682 = vpop.f32.mrb[0].mxu0
    %683 = vmatprep.mubr.bf16.mxu0 0
    %684 = vmatmul.mubr.bf16.gmra.mrb[0].mxu0 %v613
    %v685 = vpop.f32.mrb[0].mxu0
    %v686 = vadd.f32 %v524, %v685
    %v687 = vpop.f32.mrb[0].mxu0
    %v688 = vpop.f32.mrb[0].mxu0
    %v689 = vadd.f32 %v527, %v688
    %v690 = vpop.f32.mrb[0].mxu0
    %691 = vmatprep.mubr.bf16.mxu0 0
    %692 = vmatmul.mubr.bf16.gmra.mrb[0].mxu0 %v616
    %v693 = vpop.f32.mrb[0].mxu0
    %v694 = vadd.f32 %v532, %v693
    %v695 = vpop.f32.mrb[0].mxu0
    %v696 = vpop.f32.mrb[0].mxu0
    %v697 = vadd.f32 %v535, %v696
    %v698 = vpop.f32.mrb[0].mxu0
    %699 = vmatprep.mubr.bf16.mxu0 0
    %700 = vmatmul.mubr.bf16.gmra.mrb[0].mxu0 %v619
    %v701 = vpop.f32.mrb[0].mxu0
    %v702 = vadd.f32 %v540, %v701
    %v703 = vpop.f32.mrb[0].mxu0
    %v704 = vpop.f32.mrb[0].mxu0
    %v705 = vadd.f32 %v543, %v704
    %v706 = vpop.f32.mrb[0].mxu0
    %707 = vmatprep.mubr.bf16.mxu0 0
    %708 = vmatmul.mubr.bf16.gmra.mrb[0].mxu0 %v622
    %v709 = vpop.f32.mrb[0].mxu0
    %v710 = vadd.f32 %v548, %v709
    %v711 = vpop.f32.mrb[0].mxu0
    %v712 = vpop.f32.mrb[0].mxu0
    %v713 = vadd.f32 %v551, %v712
    %v714 = vpop.f32.mrb[0].mxu0
    %715 = vmatprep.mubr.bf16.mxu0 0
    %716 = vmatmul.mubr.bf16.gmra.mrb[0].mxu0 %v625
    %v717 = vpop.f32.mrb[0].mxu0
    %v718 = vadd.f32 %v556, %v717
    %v719 = vpop.f32.mrb[0].mxu0
    %v720 = vpop.f32.mrb[0].mxu0
    %v721 = vadd.f32 %v559, %v720
    %v722 = vpop.f32.mrb[0].mxu0
    %723 = vdwg.mxu0
    %v724 = vld [vmem:[#allocation26] sm:$0xf]
    %v725 = vld [vmem:[#allocation26 + $0x4] sm:$0xf]
    %v726 = vld [vmem:[#allocation26 + $0x8] sm:$0xf]
    %v727 = vld [vmem:[#allocation26 + $0xc] sm:$0xf]
    %v728 = vld [vmem:[#allocation26 + $0x10] sm:$0xf]
    %v729 = vld [vmem:[#allocation26 + $0x14] sm:$0xf]
    %v730 = vld [vmem:[#allocation26 + $0x18] sm:$0xf]
    %v731 = vld [vmem:[#allocation26 + $0x1c] sm:$0xf]
    %v732 = vld [vmem:[#allocation26 + $0x20] sm:$0xf]
    %v733 = vld [vmem:[#allocation26 + $0x24] sm:$0xf]
    %v734 = vld [vmem:[#allocation26 + $0x28] sm:$0xf]
    %v735 = vld [vmem:[#allocation26 + $0x2c] sm:$0xf]
    %v736 = vld [vmem:[#allocation26 + $0x30] sm:$0xf]
    %v737 = vld [vmem:[#allocation26 + $0x34] sm:$0xf]
    %v738 = vld [vmem:[#allocation26 + $0x38] sm:$0xf]
    %v739 = vld [vmem:[#allocation26 + $0x3c] sm:$0xf]
    %v740 = vld [vmem:[%s2] sm:$0xf]
    %v757 = vunpack.c.l.b16 %v724
    %v758 = vunpack.c.l.b16 %v725
    %v759 = vunpack.c.l.b16 %v726
    %v760 = vunpack.c.l.b16 %v727
    %v761 = vunpack.c.l.b16 %v728
    %v762 = vunpack.c.l.b16 %v729
    %v763 = vunpack.c.l.b16 %v730
    %v764 = vunpack.c.l.b16 %v731
    %v765 = vunpack.c.l.b16 %v732
    %v766 = vunpack.c.l.b16 %v733
    %v767 = vunpack.c.l.b16 %v734
    %v768 = vunpack.c.l.b16 %v735
    %v769 = vunpack.c.l.b16 %v736
    %v770 = vunpack.c.l.b16 %v737
    %v771 = vunpack.c.l.b16 %v738
    %v772 = vunpack.c.l.b16 %v739
    %v773 = vpack.c.b16 %v758, %v757
    %v774 = vpack.c.b16 %v760, %v759
    %v775 = vpack.c.b16 %v762, %v761
    %v776 = vpack.c.b16 %v764, %v763
    %v777 = vpack.c.b16 %v766, %v765
    %v778 = vpack.c.b16 %v768, %v767
    %v779 = vpack.c.b16 %v770, %v769
    %v780 = vpack.c.b16 %v772, %v771
    %v782 = vsel %vm436, %v773, 0
    %v785 = vsel %vm436, %v774, 0
    %v788 = vsel %vm436, %v775, 0
    %v791 = vsel %vm436, %v776, 0
    %v794 = vsel %vm436, %v777, 0
    %v797 = vsel %vm436, %v778, 0
    %v800 = vsel %vm436, %v779, 0
    %v803 = vsel %vm436, %v780, 0
    %v806 = vsel %vm461, %v740, 0
    %808 = vmatprep.subr.bf16.mxu0 0
    %809 = vmatpush1.bf16.msra.mxu0 %v806
    %810 = vmatprep.subr.bf16.mxu0 0
    %811 = vmatpush1.bf16.msra.mxu0 0
    %812 = vmatprep.subr.bf16.mxu0 0
    %813 = vmatpush1.bf16.msra.mxu0 0
    %814 = vmatprep.subr.bf16.mxu0 0
    %815 = vmatpush1.bf16.msra.mxu0 0
    %816 = vmatprep.subr.bf16.mxu0 0
    %817 = vmatpush1.bf16.msra.mxu0 0
    %818 = vmatprep.subr.bf16.mxu0 0
    %819 = vmatpush1.bf16.msra.mxu0 0
    %820 = vmatprep.subr.bf16.mxu0 0
    %821 = vmatpush1.bf16.msra.mxu0 0
    %822 = vmatprep.subr.bf16.mxu0 0
    %823 = vmatpush1.bf16.msra.mxu0 0
    %824 = vmatprep.subr.bf16.mxu0 0
    %825 = vmatpush1.bf16.msra.mxu0 0
    %826 = vmatprep.subr.bf16.mxu0 0
    %827 = vmatpush1.bf16.msra.mxu0 0
    %828 = vmatprep.subr.bf16.mxu0 0
    %829 = vmatpush1.bf16.msra.mxu0 0
    %830 = vmatprep.subr.bf16.mxu0 0
    %831 = vmatpush1.bf16.msra.mxu0 0
    %832 = vmatprep.subr.bf16.mxu0 0
    %833 = vmatpush1.bf16.msra.mxu0 0
    %834 = vmatprep.subr.bf16.mxu0 0
    %835 = vmatpush1.bf16.msra.mxu0 0
    %836 = vmatprep.subr.bf16.mxu0 0
    %837 = vmatpush1.bf16.msra.mxu0 0
    %838 = vmatprep.subr.bf16.mxu0 0
    %839 = vmatpush1.bf16.msra.mxu0 0
    %840 = vmatprep.mubr.bf16.mxu0 0
    %841 = vmatmul.mubr.bf16.gmra.mrb[0].mxu0 %v782
    %v842 = vpop.f32.mrb[0].mxu0
    %v843 = vadd.f32 0.0, %v842
    %v844 = vpop.f32.mrb[0].mxu0
    %v845 = vpop.f32.mrb[0].mxu0
    %v846 = vadd.f32 0.0, %v845
    %v847 = vpop.f32.mrb[0].mxu0
    %848 = vmatprep.mubr.bf16.mxu0 0
    %849 = vmatmul.mubr.bf16.gmra.mrb[0].mxu0 %v785
    %v850 = vpop.f32.mrb[0].mxu0
    %v851 = vadd.f32 0.0, %v850
    %v852 = vpop.f32.mrb[0].mxu0
    %v853 = vpop.f32.mrb[0].mxu0
    %v854 = vadd.f32 0.0, %v853
    %v855 = vpop.f32.mrb[0].mxu0
    %856 = vmatprep.mubr.bf16.mxu0 0
    %857 = vmatmul.mubr.bf16.gmra.mrb[0].mxu0 %v788
    %v858 = vpop.f32.mrb[0].mxu0
    %v859 = vadd.f32 0.0, %v858
    %v860 = vpop.f32.mrb[0].mxu0
    %v861 = vpop.f32.mrb[0].mxu0
    %v862 = vadd.f32 0.0, %v861
    %v863 = vpop.f32.mrb[0].mxu0
    %864 = vmatprep.mubr.bf16.mxu0 0
    %865 = vmatmul.mubr.bf16.gmra.mrb[0].mxu0 %v791
    %v866 = vpop.f32.mrb[0].mxu0
    %v867 = vadd.f32 0.0, %v866
    %v868 = vpop.f32.mrb[0].mxu0
    %v869 = vpop.f32.mrb[0].mxu0
    %v870 = vadd.f32 0.0, %v869
    %v871 = vpop.f32.mrb[0].mxu0
    %872 = vmatprep.mubr.bf16.mxu0 0
    %873 = vmatmul.mubr.bf16.gmra.mrb[0].mxu0 %v794
    %v874 = vpop.f32.mrb[0].mxu0
    %v875 = vadd.f32 0.0, %v874
    %v876 = vpop.f32.mrb[0].mxu0
    %v877 = vpop.f32.mrb[0].mxu0
    %v878 = vadd.f32 0.0, %v877
    %v879 = vpop.f32.mrb[0].mxu0
    %880 = vmatprep.mubr.bf16.mxu0 0
    %881 = vmatmul.mubr.bf16.gmra.mrb[0].mxu0 %v797
    %v882 = vpop.f32.mrb[0].mxu0
    %v883 = vadd.f32 0.0, %v882
    %v884 = vpop.f32.mrb[0].mxu0
    %v885 = vpop.f32.mrb[0].mxu0
    %v886 = vadd.f32 0.0, %v885
    %v887 = vpop.f32.mrb[0].mxu0
    %888 = vmatprep.mubr.bf16.mxu0 0
    %889 = vmatmul.mubr.bf16.gmra.mrb[0].mxu0 %v800
    %v890 = vpop.f32.mrb[0].mxu0
    %v891 = vadd.f32 0.0, %v890
    %v892 = vpop.f32.mrb[0].mxu0
    %v893 = vpop.f32.mrb[0].mxu0
    %v894 = vadd.f32 0.0, %v893
    %v895 = vpop.f32.mrb[0].mxu0
    %896 = vmatprep.mubr.bf16.mxu0 0
    %897 = vmatmul.mubr.bf16.gmra.mrb[0].mxu0 %v803
    %v898 = vpop.f32.mrb[0].mxu0
    %v899 = vadd.f32 0.0, %v898
    %v900 = vpop.f32.mrb[0].mxu0
    %v901 = vpop.f32.mrb[0].mxu0
    %v902 = vadd.f32 0.0, %v901
    %v903 = vpop.f32.mrb[0].mxu0
    %904 = vdwg.mxu0
    %v905 = vadd.f32 %v662, %v843
    %v906 = vadd.f32 %v665, %v846
    %v907 = vadd.f32 %v670, %v851
    %v908 = vadd.f32 %v673, %v854
    %v909 = vadd.f32 %v678, %v859
    %v910 = vadd.f32 %v681, %v862
    %v911 = vadd.f32 %v686, %v867
    %v912 = vadd.f32 %v689, %v870
    %v913 = vadd.f32 %v694, %v875
    %v914 = vadd.f32 %v697, %v878
    %v915 = vadd.f32 %v702, %v883
    %v916 = vadd.f32 %v705, %v886
    %v917 = vadd.f32 %v710, %v891
    %v918 = vadd.f32 %v713, %v894
    %v919 = vadd.f32 %v718, %v899
    %v920 = vadd.f32 %v721, %v902
    %v921 = vld [vmem:[%s3] sm:$0x1]
    %v923 = vlaneseq
    %v924 = vshrl.u32 %v923, 7
    %v925 = vsub.s32 0, %v924
    %v926 = vrot.slane %v921, %v925
    %v928 = vadd.f32 %v905, %v926
    %v929 = vadd.f32 %v906, %v926
    %v930 = vadd.f32 %v907, %v926
    %v931 = vadd.f32 %v908, %v926
    %v932 = vadd.f32 %v909, %v926
    %v933 = vadd.f32 %v910, %v926
    %v934 = vadd.f32 %v911, %v926
    %v935 = vadd.f32 %v912, %v926
    %v936 = vadd.f32 %v913, %v926
    %v937 = vadd.f32 %v914, %v926
    %v938 = vadd.f32 %v915, %v926
    %v939 = vadd.f32 %v916, %v926
    %v940 = vadd.f32 %v917, %v926
    %v941 = vadd.f32 %v918, %v926
    %v942 = vadd.f32 %v919, %v926
    %v943 = vadd.f32 %v920, %v926
    %v944 = vmul.f32 %v928, 0.5
    %v945 = vmul.f32 %v929, 0.5
    %v946 = vmul.f32 %v930, 0.5
    %v947 = vmul.f32 %v931, 0.5
    %v948 = vmul.f32 %v932, 0.5
    %v949 = vmul.f32 %v933, 0.5
    %v950 = vmul.f32 %v934, 0.5
    %v951 = vmul.f32 %v935, 0.5
    %v952 = vmul.f32 %v936, 0.5
    %v953 = vmul.f32 %v937, 0.5
    %v954 = vmul.f32 %v938, 0.5
    %v955 = vmul.f32 %v939, 0.5
    %v956 = vmul.f32 %v940, 0.5
    %v957 = vmul.f32 %v941, 0.5
    %v958 = vmul.f32 %v942, 0.5
    %v959 = vmul.f32 %v943, 0.5
    %v960 = vtanh.pop %v944
    %v961 = vtanh.pop %v945
    %v962 = vtanh.pop %v946
    %v963 = vtanh.pop %v947
    %v964 = vtanh.pop %v948
    %v965 = vtanh.pop %v949
    %v966 = vtanh.pop %v950
    %v967 = vtanh.pop %v951
    %v968 = vtanh.pop %v952
    %v969 = vtanh.pop %v953
    %v970 = vtanh.pop %v954
    %v971 = vtanh.pop %v955
    %v972 = vtanh.pop %v956
    %v973 = vtanh.pop %v957
    %v974 = vtanh.pop %v958
    %v975 = vtanh.pop %v959
    %v976 = vmul.f32 %v960, 0.5
    %v977 = vmul.f32 %v961, 0.5
    %v978 = vmul.f32 %v962, 0.5
    %v979 = vmul.f32 %v963, 0.5
    %v980 = vmul.f32 %v964, 0.5
    %v981 = vmul.f32 %v965, 0.5
    %v982 = vmul.f32 %v966, 0.5
    %v983 = vmul.f32 %v967, 0.5
    %v984 = vmul.f32 %v968, 0.5
    %v985 = vmul.f32 %v969, 0.5
    %v986 = vmul.f32 %v970, 0.5
    %v987 = vmul.f32 %v971, 0.5
    %v988 = vmul.f32 %v972, 0.5
    %v989 = vmul.f32 %v973, 0.5
    %v990 = vmul.f32 %v974, 0.5
    %v991 = vmul.f32 %v975, 0.5
    %v992 = vadd.f32 %v976, 0.5
    %v993 = vadd.f32 %v977, 0.5
    %v994 = vadd.f32 %v978, 0.5
    %v995 = vadd.f32 %v979, 0.5
    %v996 = vadd.f32 %v980, 0.5
    %v997 = vadd.f32 %v981, 0.5
    %v998 = vadd.f32 %v982, 0.5
    %v999 = vadd.f32 %v983, 0.5
    %v1000 = vadd.f32 %v984, 0.5
    %v1001 = vadd.f32 %v985, 0.5
    %v1002 = vadd.f32 %v986, 0.5
    %v1003 = vadd.f32 %v987, 0.5
    %v1004 = vadd.f32 %v988, 0.5
    %v1005 = vadd.f32 %v989, 0.5
    %v1006 = vadd.f32 %v990, 0.5
    %v1007 = vadd.f32 %v991, 0.5
    %v1008 = vmul.f32 %v928, %v992
    %v1009 = vmul.f32 %v929, %v993
    %v1010 = vmul.f32 %v930, %v994
    %v1011 = vmul.f32 %v931, %v995
    %v1012 = vmul.f32 %v932, %v996
    %v1013 = vmul.f32 %v933, %v997
    %v1014 = vmul.f32 %v934, %v998
    %v1015 = vmul.f32 %v935, %v999
    %v1016 = vmul.f32 %v936, %v1000
    %v1017 = vmul.f32 %v937, %v1001
    %v1018 = vmul.f32 %v938, %v1002
    %v1019 = vmul.f32 %v939, %v1003
    %v1020 = vmul.f32 %v940, %v1004
    %v1021 = vmul.f32 %v941, %v1005
    %v1022 = vmul.f32 %v942, %v1006
    %v1023 = vmul.f32 %v943, %v1007
    %v1024 = vld [vmem:[#allocation17] sm:$0xff]
    %v1025 = vld [vmem:[#allocation17 + $0x8] sm:$0xff]
    %v1026 = vld [vmem:[#allocation17 + $0x10] sm:$0xff]
    %v1027 = vld [vmem:[#allocation17 + $0x18] sm:$0xff]
    %v1028 = vld [vmem:[#allocation17 + $0x20] sm:$0xff]
    %v1029 = vld [vmem:[#allocation17 + $0x28] sm:$0xff]
    %v1030 = vld [vmem:[#allocation17 + $0x30] sm:$0xff]
    %v1031 = vld [vmem:[#allocation17 + $0x38] sm:$0xff]
    %v1032 = vld [vmem:[%s5] sm:$0x1]
    %v1033 = vpack.c.bf16 %v1009, %v1008
    %v1034 = vpack.c.bf16 %v1011, %v1010
    %v1035 = vpack.c.bf16 %v1013, %v1012
    %v1036 = vpack.c.bf16 %v1015, %v1014
    %v1037 = vpack.c.bf16 %v1017, %v1016
    %v1038 = vpack.c.bf16 %v1019, %v1018
    %v1039 = vpack.c.bf16 %v1021, %v1020
    %v1040 = vpack.c.bf16 %v1023, %v1022
    %v1042 = vlaneseq
    %v1043 = vshrl.u32 %v1042, 7
    %v1044 = vsub.s32 0, %v1043
    %v1045 = vrot.slane %v1032, %v1044
    %1047 = vmatprep.subr.bf16.mxu0 0
    %1048 = vmatpush1.bf16.msra.mxu0 %v1024
    %1049 = vmatprep.subr.bf16.mxu0 0
    %1050 = vmatpush1.bf16.msra.mxu0 %v1025
    %1051 = vmatprep.subr.bf16.mxu0 0
    %1052 = vmatpush1.bf16.msra.mxu0 %v1026
    %1053 = vmatprep.subr.bf16.mxu0 0
    %1054 = vmatpush1.bf16.msra.mxu0 %v1027
    %1055 = vmatprep.subr.bf16.mxu0 0
    %1056 = vmatpush1.bf16.msra.mxu0 %v1028
    %1057 = vmatprep.subr.bf16.mxu0 0
    %1058 = vmatpush1.bf16.msra.mxu0 %v1029
    %1059 = vmatprep.subr.bf16.mxu0 0
    %1060 = vmatpush1.bf16.msra.mxu0 %v1030
    %1061 = vmatprep.subr.bf16.mxu0 0
    %1062 = vmatpush1.bf16.msra.mxu0 %v1031
    %1063 = vmatprep.subr.bf16.mxu0 0
    %1064 = vmatpush1.bf16.msra.mxu0 0
    %1065 = vmatprep.subr.bf16.mxu0 0
    %1066 = vmatpush1.bf16.msra.mxu0 0
    %1067 = vmatprep.subr.bf16.mxu0 0
    %1068 = vmatpush1.bf16.msra.mxu0 0
    %1069 = vmatprep.subr.bf16.mxu0 0
    %1070 = vmatpush1.bf16.msra.mxu0 0
    %1071 = vmatprep.subr.bf16.mxu0 0
    %1072 = vmatpush1.bf16.msra.mxu0 0
    %1073 = vmatprep.subr.bf16.mxu0 0
    %1074 = vmatpush1.bf16.msra.mxu0 0
    %1075 = vmatprep.subr.bf16.mxu0 0
    %1076 = vmatpush1.bf16.msra.mxu0 0
    %1077 = vmatprep.subr.bf16.mxu0 0
    %1078 = vmatpush1.bf16.msra.mxu0 0
    %1079 = vmatprep.mubr.bf16.mxu0 0
    %1080 = vmatmul.mubr.bf16.gmra.mrb[0].mxu0 %v1033
    %v1081 = vpop.f32.mrb[0].mxu0
    %v1082 = vadd.f32 %v1045, %v1081
    %v1083 = vpop.f32.mrb[0].mxu0
    %v1084 = vpop.f32.mrb[0].mxu0
    %v1085 = vadd.f32 %v1045, %v1084
    %v1086 = vpop.f32.mrb[0].mxu0
    %1087 = vmatprep.mubr.bf16.mxu0 0
    %1088 = vmatmul.mubr.bf16.gmra.mrb[0].mxu0 %v1034
    %v1089 = vpop.f32.mrb[0].mxu0
    %v1090 = vadd.f32 %v1045, %v1089
    %v1091 = vpop.f32.mrb[0].mxu0
    %v1092 = vpop.f32.mrb[0].mxu0
    %v1093 = vadd.f32 %v1045, %v1092
    %v1094 = vpop.f32.mrb[0].mxu0
    %1095 = vmatprep.mubr.bf16.mxu0 0
    %1096 = vmatmul.mubr.bf16.gmra.mrb[0].mxu0 %v1035
    %v1097 = vpop.f32.mrb[0].mxu0
    %v1098 = vadd.f32 %v1045, %v1097
    %v1099 = vpop.f32.mrb[0].mxu0
    %v1100 = vpop.f32.mrb[0].mxu0
    %v1101 = vadd.f32 %v1045, %v1100
    %v1102 = vpop.f32.mrb[0].mxu0
    %1103 = vmatprep.mubr.bf16.mxu0 0
    %1104 = vmatmul.mubr.bf16.gmra.mrb[0].mxu0 %v1036
    %v1105 = vpop.f32.mrb[0].mxu0
    %v1106 = vadd.f32 %v1045, %v1105
    %v1107 = vpop.f32.mrb[0].mxu0
    %v1108 = vpop.f32.mrb[0].mxu0
    %v1109 = vadd.f32 %v1045, %v1108
    %v1110 = vpop.f32.mrb[0].mxu0
    %1111 = vmatprep.mubr.bf16.mxu0 0
    %1112 = vmatmul.mubr.bf16.gmra.mrb[0].mxu0 %v1037
    %v1113 = vpop.f32.mrb[0].mxu0
    %v1114 = vadd.f32 %v1045, %v1113
    %v1115 = vpop.f32.mrb[0].mxu0
    %v1116 = vpop.f32.mrb[0].mxu0
    %v1117 = vadd.f32 %v1045, %v1116
    %v1118 = vpop.f32.mrb[0].mxu0
    %1119 = vmatprep.mubr.bf16.mxu0 0
    %1120 = vmatmul.mubr.bf16.gmra.mrb[0].mxu0 %v1038
    %v1121 = vpop.f32.mrb[0].mxu0
    %v1122 = vadd.f32 %v1045, %v1121
    %v1123 = vpop.f32.mrb[0].mxu0
    %v1124 = vpop.f32.mrb[0].mxu0
    %v1125 = vadd.f32 %v1045, %v1124
    %v1126 = vpop.f32.mrb[0].mxu0
    %1127 = vmatprep.mubr.bf16.mxu0 0
    %1128 = vmatmul.mubr.bf16.gmra.mrb[0].mxu0 %v1039
    %v1129 = vpop.f32.mrb[0].mxu0
    %v1130 = vadd.f32 %v1045, %v1129
    %v1131 = vpop.f32.mrb[0].mxu0
    %v1132 = vpop.f32.mrb[0].mxu0
    %v1133 = vadd.f32 %v1045, %v1132
    %v1134 = vpop.f32.mrb[0].mxu0
    %1135 = vmatprep.mubr.bf16.mxu0 0
    %1136 = vmatmul.mubr.bf16.gmra.mrb[0].mxu0 %v1040
    %v1137 = vpop.f32.mrb[0].mxu0
    %v1138 = vadd.f32 %v1045, %v1137
    %v1139 = vpop.f32.mrb[0].mxu0
    %v1140 = vpop.f32.mrb[0].mxu0
    %v1141 = vadd.f32 %v1045, %v1140
    %v1142 = vpop.f32.mrb[0].mxu0
    %1143 = vdwg.mxu0
    %v1144 = vmul.f32 %v1082, 0.5
    %v1145 = vmul.f32 %v1085, 0.5
    %v1146 = vmul.f32 %v1090, 0.5
    %v1147 = vmul.f32 %v1093, 0.5
    %v1148 = vmul.f32 %v1098, 0.5
    %v1149 = vmul.f32 %v1101, 0.5
    %v1150 = vmul.f32 %v1106, 0.5
    %v1151 = vmul.f32 %v1109, 0.5
    %v1152 = vmul.f32 %v1114, 0.5
    %v1153 = vmul.f32 %v1117, 0.5
    %v1154 = vmul.f32 %v1122, 0.5
    %v1155 = vmul.f32 %v1125, 0.5
    %v1156 = vmul.f32 %v1130, 0.5
    %v1157 = vmul.f32 %v1133, 0.5
    %v1158 = vmul.f32 %v1138, 0.5
    %v1159 = vmul.f32 %v1141, 0.5
    %v1160 = vtanh.pop %v1144
    %v1161 = vtanh.pop %v1145
    %v1162 = vtanh.pop %v1146
    %v1163 = vtanh.pop %v1147
    %v1164 = vtanh.pop %v1148
    %v1165 = vtanh.pop %v1149
    %v1166 = vtanh.pop %v1150
    %v1167 = vtanh.pop %v1151
    %v1168 = vtanh.pop %v1152
    %v1169 = vtanh.pop %v1153
    %v1170 = vtanh.pop %v1154
    %v1171 = vtanh.pop %v1155
    %v1172 = vtanh.pop %v1156
    %v1173 = vtanh.pop %v1157
    %v1174 = vtanh.pop %v1158
    %v1175 = vtanh.pop %v1159
    %v1176 = vmul.f32 %v1160, 0.5
    %v1177 = vmul.f32 %v1161, 0.5
    %v1178 = vmul.f32 %v1162, 0.5
    %v1179 = vmul.f32 %v1163, 0.5
    %v1180 = vmul.f32 %v1164, 0.5
    %v1181 = vmul.f32 %v1165, 0.5
    %v1182 = vmul.f32 %v1166, 0.5
    %v1183 = vmul.f32 %v1167, 0.5
    %v1184 = vmul.f32 %v1168, 0.5
    %v1185 = vmul.f32 %v1169, 0.5
    %v1186 = vmul.f32 %v1170, 0.5
    %v1187 = vmul.f32 %v1171, 0.5
    %v1188 = vmul.f32 %v1172, 0.5
    %v1189 = vmul.f32 %v1173, 0.5
    %v1190 = vmul.f32 %v1174, 0.5
    %v1191 = vmul.f32 %v1175, 0.5
    %v1192 = vadd.f32 %v1176, 0.5
    %v1193 = vadd.f32 %v1177, 0.5
    %v1194 = vadd.f32 %v1178, 0.5
    %v1195 = vadd.f32 %v1179, 0.5
    %v1196 = vadd.f32 %v1180, 0.5
    %v1197 = vadd.f32 %v1181, 0.5
    %v1198 = vadd.f32 %v1182, 0.5
    %v1199 = vadd.f32 %v1183, 0.5
    %v1200 = vadd.f32 %v1184, 0.5
    %v1201 = vadd.f32 %v1185, 0.5
    %v1202 = vadd.f32 %v1186, 0.5
    %v1203 = vadd.f32 %v1187, 0.5
    %v1204 = vadd.f32 %v1188, 0.5
    %v1205 = vadd.f32 %v1189, 0.5
    %v1206 = vadd.f32 %v1190, 0.5
    %v1207 = vadd.f32 %v1191, 0.5
    %v1208 = vmul.f32 %v1082, %v1192
    %v1209 = vmul.f32 %v1085, %v1193
    %v1210 = vmul.f32 %v1090, %v1194
    %v1211 = vmul.f32 %v1093, %v1195
    %v1212 = vmul.f32 %v1098, %v1196
    %v1213 = vmul.f32 %v1101, %v1197
    %v1214 = vmul.f32 %v1106, %v1198
    %v1215 = vmul.f32 %v1109, %v1199
    %v1216 = vmul.f32 %v1114, %v1200
    %v1217 = vmul.f32 %v1117, %v1201
    %v1218 = vmul.f32 %v1122, %v1202
    %v1219 = vmul.f32 %v1125, %v1203
    %v1220 = vmul.f32 %v1130, %v1204
    %v1221 = vmul.f32 %v1133, %v1205
    %v1222 = vmul.f32 %v1138, %v1206
    %v1223 = vmul.f32 %v1141, %v1207
    %v1224 = vld [vmem:[#allocation19] sm:$0xff]
    %v1225 = vld [vmem:[#allocation19 + $0x8] sm:$0xff]
    %v1226 = vld [vmem:[#allocation19 + $0x10] sm:$0xff]
    %v1227 = vld [vmem:[#allocation19 + $0x18] sm:$0xff]
    %v1228 = vld [vmem:[#allocation19 + $0x20] sm:$0xff]
    %v1229 = vld [vmem:[#allocation19 + $0x28] sm:$0xff]
    %v1230 = vld [vmem:[#allocation19 + $0x30] sm:$0xff]
    %v1231 = vld [vmem:[#allocation19 + $0x38] sm:$0xff]
    %v1232 = vld [vmem:[%s7] sm:$0x1]
    %v1233 = vpack.c.bf16 %v1209, %v1208
    %v1234 = vpack.c.bf16 %v1211, %v1210
    %v1235 = vpack.c.bf16 %v1213, %v1212
    %v1236 = vpack.c.bf16 %v1215, %v1214
    %v1237 = vpack.c.bf16 %v1217, %v1216
    %v1238 = vpack.c.bf16 %v1219, %v1218
    %v1239 = vpack.c.bf16 %v1221, %v1220
    %v1240 = vpack.c.bf16 %v1223, %v1222
    %v1242 = vlaneseq
    %v1243 = vshrl.u32 %v1242, 7
    %v1244 = vsub.s32 0, %v1243
    %v1245 = vrot.slane %v1232, %v1244
    %1247 = vmatprep.subr.bf16.mxu0 0
    %1248 = vmatpush1.bf16.msra.mxu0 %v1224
    %1249 = vmatprep.subr.bf16.mxu0 0
    %1250 = vmatpush1.bf16.msra.mxu0 %v1225
    %1251 = vmatprep.subr.bf16.mxu0 0
    %1252 = vmatpush1.bf16.msra.mxu0 %v1226
    %1253 = vmatprep.subr.bf16.mxu0 0
    %1254 = vmatpush1.bf16.msra.mxu0 %v1227
    %1255 = vmatprep.subr.bf16.mxu0 0
    %1256 = vmatpush1.bf16.msra.mxu0 %v1228
    %1257 = vmatprep.subr.bf16.mxu0 0
    %1258 = vmatpush1.bf16.msra.mxu0 %v1229
    %1259 = vmatprep.subr.bf16.mxu0 0
    %1260 = vmatpush1.bf16.msra.mxu0 %v1230
    %1261 = vmatprep.subr.bf16.mxu0 0
    %1262 = vmatpush1.bf16.msra.mxu0 %v1231
    %1263 = vmatprep.subr.bf16.mxu0 0
    %1264 = vmatpush1.bf16.msra.mxu0 0
    %1265 = vmatprep.subr.bf16.mxu0 0
    %1266 = vmatpush1.bf16.msra.mxu0 0
    %1267 = vmatprep.subr.bf16.mxu0 0
    %1268 = vmatpush1.bf16.msra.mxu0 0
    %1269 = vmatprep.subr.bf16.mxu0 0
    %1270 = vmatpush1.bf16.msra.mxu0 0
    %1271 = vmatprep.subr.bf16.mxu0 0
    %1272 = vmatpush1.bf16.msra.mxu0 0
    %1273 = vmatprep.subr.bf16.mxu0 0
    %1274 = vmatpush1.bf16.msra.mxu0 0
    %1275 = vmatprep.subr.bf16.mxu0 0
    %1276 = vmatpush1.bf16.msra.mxu0 0
    %1277 = vmatprep.subr.bf16.mxu0 0
    %1278 = vmatpush1.bf16.msra.mxu0 0
    %1279 = vmatprep.mubr.bf16.mxu0 0
    %1280 = vmatmul.mubr.bf16.gmra.mrb[0].mxu0 %v1233
    %v1281 = vpop.f32.mrb[0].mxu0
    %v1282 = vadd.f32 %v1245, %v1281
    %v1283 = vpop.f32.mrb[0].mxu0
    %v1284 = vpop.f32.mrb[0].mxu0
    %v1285 = vadd.f32 %v1245, %v1284
    %v1286 = vpop.f32.mrb[0].mxu0
    %1287 = vmatprep.mubr.bf16.mxu0 0
    %1288 = vmatmul.mubr.bf16.gmra.mrb[0].mxu0 %v1234
    %v1289 = vpop.f32.mrb[0].mxu0
    %v1290 = vadd.f32 %v1245, %v1289
    %v1291 = vpop.f32.mrb[0].mxu0
    %v1292 = vpop.f32.mrb[0].mxu0
    %v1293 = vadd.f32 %v1245, %v1292
    %v1294 = vpop.f32.mrb[0].mxu0
    %1295 = vmatprep.mubr.bf16.mxu0 0
    %1296 = vmatmul.mubr.bf16.gmra.mrb[0].mxu0 %v1235
    %v1297 = vpop.f32.mrb[0].mxu0
    %v1298 = vadd.f32 %v1245, %v1297
    %v1299 = vpop.f32.mrb[0].mxu0
    %v1300 = vpop.f32.mrb[0].mxu0
    %v1301 = vadd.f32 %v1245, %v1300
    %v1302 = vpop.f32.mrb[0].mxu0
    %1303 = vmatprep.mubr.bf16.mxu0 0
    %1304 = vmatmul.mubr.bf16.gmra.mrb[0].mxu0 %v1236
    %v1305 = vpop.f32.mrb[0].mxu0
    %v1306 = vadd.f32 %v1245, %v1305
    %v1307 = vpop.f32.mrb[0].mxu0
    %v1308 = vpop.f32.mrb[0].mxu0
    %v1309 = vadd.f32 %v1245, %v1308
    %v1310 = vpop.f32.mrb[0].mxu0
    %1311 = vmatprep.mubr.bf16.mxu0 0
    %1312 = vmatmul.mubr.bf16.gmra.mrb[0].mxu0 %v1237
    %v1313 = vpop.f32.mrb[0].mxu0
    %v1314 = vadd.f32 %v1245, %v1313
    %v1315 = vpop.f32.mrb[0].mxu0
    %v1316 = vpop.f32.mrb[0].mxu0
    %v1317 = vadd.f32 %v1245, %v1316
    %v1318 = vpop.f32.mrb[0].mxu0
    %1319 = vmatprep.mubr.bf16.mxu0 0
    %1320 = vmatmul.mubr.bf16.gmra.mrb[0].mxu0 %v1238
    %v1321 = vpop.f32.mrb[0].mxu0
    %v1322 = vadd.f32 %v1245, %v1321
    %v1323 = vpop.f32.mrb[0].mxu0
    %v1324 = vpop.f32.mrb[0].mxu0
    %v1325 = vadd.f32 %v1245, %v1324
    %v1326 = vpop.f32.mrb[0].mxu0
    %1327 = vmatprep.mubr.bf16.mxu0 0
    %1328 = vmatmul.mubr.bf16.gmra.mrb[0].mxu0 %v1239
    %v1329 = vpop.f32.mrb[0].mxu0
    %v1330 = vadd.f32 %v1245, %v1329
    %v1331 = vpop.f32.mrb[0].mxu0
    %v1332 = vpop.f32.mrb[0].mxu0
    %v1333 = vadd.f32 %v1245, %v1332
    %v1334 = vpop.f32.mrb[0].mxu0
    %1335 = vmatprep.mubr.bf16.mxu0 0
    %1336 = vmatmul.mubr.bf16.gmra.mrb[0].mxu0 %v1240
    %v1337 = vpop.f32.mrb[0].mxu0
    %v1338 = vadd.f32 %v1245, %v1337
    %v1339 = vpop.f32.mrb[0].mxu0
    %v1340 = vpop.f32.mrb[0].mxu0
    %v1341 = vadd.f32 %v1245, %v1340
    %v1342 = vpop.f32.mrb[0].mxu0
    %1343 = vdwg.mxu0
    %v1344 = vmul.f32 %v1282, 0.5
    %v1345 = vmul.f32 %v1285, 0.5
    %v1346 = vmul.f32 %v1290, 0.5
    %v1347 = vmul.f32 %v1293, 0.5
    %v1348 = vmul.f32 %v1298, 0.5
    %v1349 = vmul.f32 %v1301, 0.5
    %v1350 = vmul.f32 %v1306, 0.5
    %v1351 = vmul.f32 %v1309, 0.5
    %v1352 = vmul.f32 %v1314, 0.5
    %v1353 = vmul.f32 %v1317, 0.5
    %v1354 = vmul.f32 %v1322, 0.5
    %v1355 = vmul.f32 %v1325, 0.5
    %v1356 = vmul.f32 %v1330, 0.5
    %v1357 = vmul.f32 %v1333, 0.5
    %v1358 = vmul.f32 %v1338, 0.5
    %v1359 = vmul.f32 %v1341, 0.5
    %v1360 = vtanh.pop %v1344
    %v1361 = vtanh.pop %v1345
    %v1362 = vtanh.pop %v1346
    %v1363 = vtanh.pop %v1347
    %v1364 = vtanh.pop %v1348
    %v1365 = vtanh.pop %v1349
    %v1366 = vtanh.pop %v1350
    %v1367 = vtanh.pop %v1351
    %v1368 = vtanh.pop %v1352
    %v1369 = vtanh.pop %v1353
    %v1370 = vtanh.pop %v1354
    %v1371 = vtanh.pop %v1355
    %v1372 = vtanh.pop %v1356
    %v1373 = vtanh.pop %v1357
    %v1374 = vtanh.pop %v1358
    %v1375 = vtanh.pop %v1359
    %v1376 = vmul.f32 %v1360, 0.5
    %v1377 = vmul.f32 %v1361, 0.5
    %v1378 = vmul.f32 %v1362, 0.5
    %v1379 = vmul.f32 %v1363, 0.5
    %v1380 = vmul.f32 %v1364, 0.5
    %v1381 = vmul.f32 %v1365, 0.5
    %v1382 = vmul.f32 %v1366, 0.5
    %v1383 = vmul.f32 %v1367, 0.5
    %v1384 = vmul.f32 %v1368, 0.5
    %v1385 = vmul.f32 %v1369, 0.5
    %v1386 = vmul.f32 %v1370, 0.5
    %v1387 = vmul.f32 %v1371, 0.5
    %v1388 = vmul.f32 %v1372, 0.5
    %v1389 = vmul.f32 %v1373, 0.5
    %v1390 = vmul.f32 %v1374, 0.5
    %v1391 = vmul.f32 %v1375, 0.5
    %v1392 = vadd.f32 %v1376, 0.5
    %v1393 = vadd.f32 %v1377, 0.5
    %v1394 = vadd.f32 %v1378, 0.5
    %v1395 = vadd.f32 %v1379, 0.5
    %v1396 = vadd.f32 %v1380, 0.5
    %v1397 = vadd.f32 %v1381, 0.5
    %v1398 = vadd.f32 %v1382, 0.5
    %v1399 = vadd.f32 %v1383, 0.5
    %v1400 = vadd.f32 %v1384, 0.5
    %v1401 = vadd.f32 %v1385, 0.5
    %v1402 = vadd.f32 %v1386, 0.5
    %v1403 = vadd.f32 %v1387, 0.5
    %v1404 = vadd.f32 %v1388, 0.5
    %v1405 = vadd.f32 %v1389, 0.5
    %v1406 = vadd.f32 %v1390, 0.5
    %v1407 = vadd.f32 %v1391, 0.5
    %v1408 = vmul.f32 %v1282, %v1392
    %v1409 = vmul.f32 %v1285, %v1393
    %v1410 = vmul.f32 %v1290, %v1394
    %v1411 = vmul.f32 %v1293, %v1395
    %v1412 = vmul.f32 %v1298, %v1396
    %v1413 = vmul.f32 %v1301, %v1397
    %v1414 = vmul.f32 %v1306, %v1398
    %v1415 = vmul.f32 %v1309, %v1399
    %v1416 = vmul.f32 %v1314, %v1400
    %v1417 = vmul.f32 %v1317, %v1401
    %v1418 = vmul.f32 %v1322, %v1402
    %v1419 = vmul.f32 %v1325, %v1403
    %v1420 = vmul.f32 %v1330, %v1404
    %v1421 = vmul.f32 %v1333, %v1405
    %v1422 = vmul.f32 %v1338, %v1406
    %v1423 = vmul.f32 %v1341, %v1407
    %v1424 = vld [vmem:[#allocation21] sm:$0xff]
    %v1425 = vld [vmem:[#allocation21 + $0x8] sm:$0xff]
    %v1426 = vld [vmem:[#allocation21 + $0x10] sm:$0xff]
    %v1427 = vld [vmem:[#allocation21 + $0x18] sm:$0xff]
    %v1428 = vld [vmem:[#allocation21 + $0x20] sm:$0xff]
    %v1429 = vld [vmem:[#allocation21 + $0x28] sm:$0xff]
    %v1430 = vld [vmem:[#allocation21 + $0x30] sm:$0xff]
    %v1431 = vld [vmem:[#allocation21 + $0x38] sm:$0xff]
    %v1432 = vld [vmem:[%s9] sm:$0x1]
    %v1433 = vpack.c.bf16 %v1409, %v1408
    %v1434 = vpack.c.bf16 %v1411, %v1410
    %v1435 = vpack.c.bf16 %v1413, %v1412
    %v1436 = vpack.c.bf16 %v1415, %v1414
    %v1437 = vpack.c.bf16 %v1417, %v1416
    %v1438 = vpack.c.bf16 %v1419, %v1418
    %v1439 = vpack.c.bf16 %v1421, %v1420
    %v1440 = vpack.c.bf16 %v1423, %v1422
    %v1442 = vlaneseq
    %v1443 = vshrl.u32 %v1442, 7
    %v1444 = vsub.s32 0, %v1443
    %v1445 = vrot.slane %v1432, %v1444
    %1447 = vmatprep.subr.bf16.mxu0 0
    %1448 = vmatpush1.bf16.msra.mxu0 %v1424
    %1449 = vmatprep.subr.bf16.mxu0 0
    %1450 = vmatpush1.bf16.msra.mxu0 %v1425
    %1451 = vmatprep.subr.bf16.mxu0 0
    %1452 = vmatpush1.bf16.msra.mxu0 %v1426
    %1453 = vmatprep.subr.bf16.mxu0 0
    %1454 = vmatpush1.bf16.msra.mxu0 %v1427
    %1455 = vmatprep.subr.bf16.mxu0 0
    %1456 = vmatpush1.bf16.msra.mxu0 %v1428
    %1457 = vmatprep.subr.bf16.mxu0 0
    %1458 = vmatpush1.bf16.msra.mxu0 %v1429
    %1459 = vmatprep.subr.bf16.mxu0 0
    %1460 = vmatpush1.bf16.msra.mxu0 %v1430
    %1461 = vmatprep.subr.bf16.mxu0 0
    %1462 = vmatpush1.bf16.msra.mxu0 %v1431
    %1463 = vmatprep.subr.bf16.mxu0 0
    %1464 = vmatpush1.bf16.msra.mxu0 0
    %1465 = vmatprep.subr.bf16.mxu0 0
    %1466 = vmatpush1.bf16.msra.mxu0 0
    %1467 = vmatprep.subr.bf16.mxu0 0
    %1468 = vmatpush1.bf16.msra.mxu0 0
    %1469 = vmatprep.subr.bf16.mxu0 0
    %1470 = vmatpush1.bf16.msra.mxu0 0
    %1471 = vmatprep.subr.bf16.mxu0 0
    %1472 = vmatpush1.bf16.msra.mxu0 0
    %1473 = vmatprep.subr.bf16.mxu0 0
    %1474 = vmatpush1.bf16.msra.mxu0 0
    %1475 = vmatprep.subr.bf16.mxu0 0
    %1476 = vmatpush1.bf16.msra.mxu0 0
    %1477 = vmatprep.subr.bf16.mxu0 0
    %1478 = vmatpush1.bf16.msra.mxu0 0
    %1479 = vmatprep.mubr.bf16.mxu0 0
    %1480 = vmatmul.mubr.bf16.gmra.mrb[0].mxu0 %v1433
    %v1481 = vpop.f32.mrb[0].mxu0
    %v1482 = vadd.f32 %v1445, %v1481
    %v1483 = vpop.f32.mrb[0].mxu0
    %v1484 = vpop.f32.mrb[0].mxu0
    %v1485 = vadd.f32 %v1445, %v1484
    %v1486 = vpop.f32.mrb[0].mxu0
    %1487 = vmatprep.mubr.bf16.mxu0 0
    %1488 = vmatmul.mubr.bf16.gmra.mrb[0].mxu0 %v1434
    %v1489 = vpop.f32.mrb[0].mxu0
    %v1490 = vadd.f32 %v1445, %v1489
    %v1491 = vpop.f32.mrb[0].mxu0
    %v1492 = vpop.f32.mrb[0].mxu0
    %v1493 = vadd.f32 %v1445, %v1492
    %v1494 = vpop.f32.mrb[0].mxu0
    %1495 = vmatprep.mubr.bf16.mxu0 0
    %1496 = vmatmul.mubr.bf16.gmra.mrb[0].mxu0 %v1435
    %v1497 = vpop.f32.mrb[0].mxu0
    %v1498 = vadd.f32 %v1445, %v1497
    %v1499 = vpop.f32.mrb[0].mxu0
    %v1500 = vpop.f32.mrb[0].mxu0
    %v1501 = vadd.f32 %v1445, %v1500
    %v1502 = vpop.f32.mrb[0].mxu0
    %1503 = vmatprep.mubr.bf16.mxu0 0
    %1504 = vmatmul.mubr.bf16.gmra.mrb[0].mxu0 %v1436
    %v1505 = vpop.f32.mrb[0].mxu0
    %v1506 = vadd.f32 %v1445, %v1505
    %v1507 = vpop.f32.mrb[0].mxu0
    %v1508 = vpop.f32.mrb[0].mxu0
    %v1509 = vadd.f32 %v1445, %v1508
    %v1510 = vpop.f32.mrb[0].mxu0
    %1511 = vmatprep.mubr.bf16.mxu0 0
    %1512 = vmatmul.mubr.bf16.gmra.mrb[0].mxu0 %v1437
    %v1513 = vpop.f32.mrb[0].mxu0
    %v1514 = vadd.f32 %v1445, %v1513
    %v1515 = vpop.f32.mrb[0].mxu0
    %v1516 = vpop.f32.mrb[0].mxu0
    %v1517 = vadd.f32 %v1445, %v1516
    %v1518 = vpop.f32.mrb[0].mxu0
    %1519 = vmatprep.mubr.bf16.mxu0 0
    %1520 = vmatmul.mubr.bf16.gmra.mrb[0].mxu0 %v1438
    %v1521 = vpop.f32.mrb[0].mxu0
    %v1522 = vadd.f32 %v1445, %v1521
    %v1523 = vpop.f32.mrb[0].mxu0
    %v1524 = vpop.f32.mrb[0].mxu0
    %v1525 = vadd.f32 %v1445, %v1524
    %v1526 = vpop.f32.mrb[0].mxu0
    %1527 = vmatprep.mubr.bf16.mxu0 0
    %1528 = vmatmul.mubr.bf16.gmra.mrb[0].mxu0 %v1439
    %v1529 = vpop.f32.mrb[0].mxu0
    %v1530 = vadd.f32 %v1445, %v1529
    %v1531 = vpop.f32.mrb[0].mxu0
    %v1532 = vpop.f32.mrb[0].mxu0
    %v1533 = vadd.f32 %v1445, %v1532
    %v1534 = vpop.f32.mrb[0].mxu0
    %1535 = vmatprep.mubr.bf16.mxu0 0
    %1536 = vmatmul.mubr.bf16.gmra.mrb[0].mxu0 %v1440
    %v1537 = vpop.f32.mrb[0].mxu0
    %v1538 = vadd.f32 %v1445, %v1537
    %v1539 = vpop.f32.mrb[0].mxu0
    %v1540 = vpop.f32.mrb[0].mxu0
    %v1541 = vadd.f32 %v1445, %v1540
    %v1542 = vpop.f32.mrb[0].mxu0
    %1543 = vdwg.mxu0
    %v1544 = vmul.f32 %v1482, 0.5
    %v1545 = vmul.f32 %v1485, 0.5
    %v1546 = vmul.f32 %v1490, 0.5
    %v1547 = vmul.f32 %v1493, 0.5
    %v1548 = vmul.f32 %v1498, 0.5
    %v1549 = vmul.f32 %v1501, 0.5
    %v1550 = vmul.f32 %v1506, 0.5
    %v1551 = vmul.f32 %v1509, 0.5
    %v1552 = vmul.f32 %v1514, 0.5
    %v1553 = vmul.f32 %v1517, 0.5
    %v1554 = vmul.f32 %v1522, 0.5
    %v1555 = vmul.f32 %v1525, 0.5
    %v1556 = vmul.f32 %v1530, 0.5
    %v1557 = vmul.f32 %v1533, 0.5
    %v1558 = vmul.f32 %v1538, 0.5
    %v1559 = vmul.f32 %v1541, 0.5
    %v1560 = vtanh.pop %v1544
    %v1561 = vtanh.pop %v1545
    %v1562 = vtanh.pop %v1546
    %v1563 = vtanh.pop %v1547
    %v1564 = vtanh.pop %v1548
    %v1565 = vtanh.pop %v1549
    %v1566 = vtanh.pop %v1550
    %v1567 = vtanh.pop %v1551
    %v1568 = vtanh.pop %v1552
    %v1569 = vtanh.pop %v1553
    %v1570 = vtanh.pop %v1554
    %v1571 = vtanh.pop %v1555
    %v1572 = vtanh.pop %v1556
    %v1573 = vtanh.pop %v1557
    %v1574 = vtanh.pop %v1558
    %v1575 = vtanh.pop %v1559
    %v1576 = vmul.f32 %v1560, 0.5
    %v1577 = vmul.f32 %v1561, 0.5
    %v1578 = vmul.f32 %v1562, 0.5
    %v1579 = vmul.f32 %v1563, 0.5
    %v1580 = vmul.f32 %v1564, 0.5
    %v1581 = vmul.f32 %v1565, 0.5
    %v1582 = vmul.f32 %v1566, 0.5
    %v1583 = vmul.f32 %v1567, 0.5
    %v1584 = vmul.f32 %v1568, 0.5
    %v1585 = vmul.f32 %v1569, 0.5
    %v1586 = vmul.f32 %v1570, 0.5
    %v1587 = vmul.f32 %v1571, 0.5
    %v1588 = vmul.f32 %v1572, 0.5
    %v1589 = vmul.f32 %v1573, 0.5
    %v1590 = vmul.f32 %v1574, 0.5
    %v1591 = vmul.f32 %v1575, 0.5
    %v1592 = vadd.f32 %v1576, 0.5
    %v1593 = vadd.f32 %v1577, 0.5
    %v1594 = vadd.f32 %v1578, 0.5
    %v1595 = vadd.f32 %v1579, 0.5
    %v1596 = vadd.f32 %v1580, 0.5
    %v1597 = vadd.f32 %v1581, 0.5
    %v1598 = vadd.f32 %v1582, 0.5
    %v1599 = vadd.f32 %v1583, 0.5
    %v1600 = vadd.f32 %v1584, 0.5
    %v1601 = vadd.f32 %v1585, 0.5
    %v1602 = vadd.f32 %v1586, 0.5
    %v1603 = vadd.f32 %v1587, 0.5
    %v1604 = vadd.f32 %v1588, 0.5
    %v1605 = vadd.f32 %v1589, 0.5
    %v1606 = vadd.f32 %v1590, 0.5
    %v1607 = vadd.f32 %v1591, 0.5
    %v1608 = vmul.f32 %v1482, %v1592
    %v1609 = vmul.f32 %v1485, %v1593
    %v1610 = vmul.f32 %v1490, %v1594
    %v1611 = vmul.f32 %v1493, %v1595
    %v1612 = vmul.f32 %v1498, %v1596
    %v1613 = vmul.f32 %v1501, %v1597
    %v1614 = vmul.f32 %v1506, %v1598
    %v1615 = vmul.f32 %v1509, %v1599
    %v1616 = vmul.f32 %v1514, %v1600
    %v1617 = vmul.f32 %v1517, %v1601
    %v1618 = vmul.f32 %v1522, %v1602
    %v1619 = vmul.f32 %v1525, %v1603
    %v1620 = vmul.f32 %v1530, %v1604
    %v1621 = vmul.f32 %v1533, %v1605
    %v1622 = vmul.f32 %v1538, %v1606
    %v1623 = vmul.f32 %v1541, %v1607
    %v1624 = vld [vmem:[#allocation22] sm:$0xff]
    %v1625 = vld [vmem:[#allocation22 + $0x8] sm:$0xff]
    %v1626 = vld [vmem:[#allocation22 + $0x10] sm:$0xff]
    %v1627 = vld [vmem:[#allocation22 + $0x18] sm:$0xff]
    %v1628 = vld [vmem:[#allocation22 + $0x20] sm:$0xff]
    %v1629 = vld [vmem:[#allocation22 + $0x28] sm:$0xff]
    %v1630 = vld [vmem:[#allocation22 + $0x30] sm:$0xff]
    %v1631 = vld [vmem:[#allocation22 + $0x38] sm:$0xff]
    %v1632 = vld [vmem:[%s11] sm:$0x1]
    %v1633 = vpack.c.bf16 %v1609, %v1608
    %v1634 = vpack.c.bf16 %v1611, %v1610
    %v1635 = vpack.c.bf16 %v1613, %v1612
    %v1636 = vpack.c.bf16 %v1615, %v1614
    %v1637 = vpack.c.bf16 %v1617, %v1616
    %v1638 = vpack.c.bf16 %v1619, %v1618
    %v1639 = vpack.c.bf16 %v1621, %v1620
    %v1640 = vpack.c.bf16 %v1623, %v1622
    %v1642 = vlaneseq
    %v1643 = vshrl.u32 %v1642, 7
    %v1644 = vsub.s32 0, %v1643
    %v1645 = vrot.slane %v1632, %v1644
    %1647 = vmatprep.subr.bf16.mxu0 0
    %1648 = vmatpush1.bf16.msra.mxu0 %v1624
    %1649 = vmatprep.subr.bf16.mxu0 0
    %1650 = vmatpush1.bf16.msra.mxu0 %v1625
    %1651 = vmatprep.subr.bf16.mxu0 0
    %1652 = vmatpush1.bf16.msra.mxu0 %v1626
    %1653 = vmatprep.subr.bf16.mxu0 0
    %1654 = vmatpush1.bf16.msra.mxu0 %v1627
    %1655 = vmatprep.subr.bf16.mxu0 0
    %1656 = vmatpush1.bf16.msra.mxu0 %v1628
    %1657 = vmatprep.subr.bf16.mxu0 0
    %1658 = vmatpush1.bf16.msra.mxu0 %v1629
    %1659 = vmatprep.subr.bf16.mxu0 0
    %1660 = vmatpush1.bf16.msra.mxu0 %v1630
    %1661 = vmatprep.subr.bf16.mxu0 0
    %1662 = vmatpush1.bf16.msra.mxu0 %v1631
    %1663 = vmatprep.subr.bf16.mxu0 0
    %1664 = vmatpush1.bf16.msra.mxu0 0
    %1665 = vmatprep.subr.bf16.mxu0 0
    %1666 = vmatpush1.bf16.msra.mxu0 0
    %1667 = vmatprep.subr.bf16.mxu0 0
    %1668 = vmatpush1.bf16.msra.mxu0 0
    %1669 = vmatprep.subr.bf16.mxu0 0
    %1670 = vmatpush1.bf16.msra.mxu0 0
    %1671 = vmatprep.subr.bf16.mxu0 0
    %1672 = vmatpush1.bf16.msra.mxu0 0
    %1673 = vmatprep.subr.bf16.mxu0 0
    %1674 = vmatpush1.bf16.msra.mxu0 0
    %1675 = vmatprep.subr.bf16.mxu0 0
    %1676 = vmatpush1.bf16.msra.mxu0 0
    %1677 = vmatprep.subr.bf16.mxu0 0
    %1678 = vmatpush1.bf16.msra.mxu0 0
    %1679 = vmatprep.mubr.bf16.mxu0 0
    %1680 = vmatmul.mubr.bf16.gmra.mrb[0].mxu0 %v1633
    %v1681 = vpop.f32.mrb[0].mxu0
    %v1682 = vadd.f32 %v1645, %v1681
    %v1683 = vpop.f32.mrb[0].mxu0
    %v1684 = vpop.f32.mrb[0].mxu0
    %v1685 = vadd.f32 %v1645, %v1684
    %v1686 = vpop.f32.mrb[0].mxu0
    %1687 = vmatprep.mubr.bf16.mxu0 0
    %1688 = vmatmul.mubr.bf16.gmra.mrb[0].mxu0 %v1634
    %v1689 = vpop.f32.mrb[0].mxu0
    %v1690 = vadd.f32 %v1645, %v1689
    %v1691 = vpop.f32.mrb[0].mxu0
    %v1692 = vpop.f32.mrb[0].mxu0
    %v1693 = vadd.f32 %v1645, %v1692
    %v1694 = vpop.f32.mrb[0].mxu0
    %1695 = vmatprep.mubr.bf16.mxu0 0
    %1696 = vmatmul.mubr.bf16.gmra.mrb[0].mxu0 %v1635
    %v1697 = vpop.f32.mrb[0].mxu0
    %v1698 = vadd.f32 %v1645, %v1697
    %v1699 = vpop.f32.mrb[0].mxu0
    %v1700 = vpop.f32.mrb[0].mxu0
    %v1701 = vadd.f32 %v1645, %v1700
    %v1702 = vpop.f32.mrb[0].mxu0
    %1703 = vmatprep.mubr.bf16.mxu0 0
    %1704 = vmatmul.mubr.bf16.gmra.mrb[0].mxu0 %v1636
    %v1705 = vpop.f32.mrb[0].mxu0
    %v1706 = vadd.f32 %v1645, %v1705
    %v1707 = vpop.f32.mrb[0].mxu0
    %v1708 = vpop.f32.mrb[0].mxu0
    %v1709 = vadd.f32 %v1645, %v1708
    %v1710 = vpop.f32.mrb[0].mxu0
    %1711 = vmatprep.mubr.bf16.mxu0 0
    %1712 = vmatmul.mubr.bf16.gmra.mrb[0].mxu0 %v1637
    %v1713 = vpop.f32.mrb[0].mxu0
    %v1714 = vadd.f32 %v1645, %v1713
    %v1715 = vpop.f32.mrb[0].mxu0
    %v1716 = vpop.f32.mrb[0].mxu0
    %v1717 = vadd.f32 %v1645, %v1716
    %v1718 = vpop.f32.mrb[0].mxu0
    %1719 = vmatprep.mubr.bf16.mxu0 0
    %1720 = vmatmul.mubr.bf16.gmra.mrb[0].mxu0 %v1638
    %v1721 = vpop.f32.mrb[0].mxu0
    %v1722 = vadd.f32 %v1645, %v1721
    %v1723 = vpop.f32.mrb[0].mxu0
    %v1724 = vpop.f32.mrb[0].mxu0
    %v1725 = vadd.f32 %v1645, %v1724
    %v1726 = vpop.f32.mrb[0].mxu0
    %1727 = vmatprep.mubr.bf16.mxu0 0
    %1728 = vmatmul.mubr.bf16.gmra.mrb[0].mxu0 %v1639
    %v1729 = vpop.f32.mrb[0].mxu0
    %v1730 = vadd.f32 %v1645, %v1729
    %v1731 = vpop.f32.mrb[0].mxu0
    %v1732 = vpop.f32.mrb[0].mxu0
    %v1733 = vadd.f32 %v1645, %v1732
    %v1734 = vpop.f32.mrb[0].mxu0
    %1735 = vmatprep.mubr.bf16.mxu0 0
    %1736 = vmatmul.mubr.bf16.gmra.mrb[0].mxu0 %v1640
    %v1737 = vpop.f32.mrb[0].mxu0
    %v1738 = vadd.f32 %v1645, %v1737
    %v1739 = vpop.f32.mrb[0].mxu0
    %v1740 = vpop.f32.mrb[0].mxu0
    %v1741 = vadd.f32 %v1645, %v1740
    %v1742 = vpop.f32.mrb[0].mxu0
    %1743 = vdwg.mxu0
    %v1744 = vmul.f32 %v1682, 0.5
    %v1745 = vmul.f32 %v1685, 0.5
    %v1746 = vmul.f32 %v1690, 0.5
    %v1747 = vmul.f32 %v1693, 0.5
    %v1748 = vmul.f32 %v1698, 0.5
    %v1749 = vmul.f32 %v1701, 0.5
    %v1750 = vmul.f32 %v1706, 0.5
    %v1751 = vmul.f32 %v1709, 0.5
    %v1752 = vmul.f32 %v1714, 0.5
    %v1753 = vmul.f32 %v1717, 0.5
    %v1754 = vmul.f32 %v1722, 0.5
    %v1755 = vmul.f32 %v1725, 0.5
    %v1756 = vmul.f32 %v1730, 0.5
    %v1757 = vmul.f32 %v1733, 0.5
    %v1758 = vmul.f32 %v1738, 0.5
    %v1759 = vmul.f32 %v1741, 0.5
    %v1760 = vtanh.pop %v1744
    %v1761 = vtanh.pop %v1745
    %v1762 = vtanh.pop %v1746
    %v1763 = vtanh.pop %v1747
    %v1764 = vtanh.pop %v1748
    %v1765 = vtanh.pop %v1749
    %v1766 = vtanh.pop %v1750
    %v1767 = vtanh.pop %v1751
    %v1768 = vtanh.pop %v1752
    %v1769 = vtanh.pop %v1753
    %v1770 = vtanh.pop %v1754
    %v1771 = vtanh.pop %v1755
    %v1772 = vtanh.pop %v1756
    %v1773 = vtanh.pop %v1757
    %v1774 = vtanh.pop %v1758
    %v1775 = vtanh.pop %v1759
    %v1776 = vmul.f32 %v1760, 0.5
    %v1777 = vmul.f32 %v1761, 0.5
    %v1778 = vmul.f32 %v1762, 0.5
    %v1779 = vmul.f32 %v1763, 0.5
    %v1780 = vmul.f32 %v1764, 0.5
    %v1781 = vmul.f32 %v1765, 0.5
    %v1782 = vmul.f32 %v1766, 0.5
    %v1783 = vmul.f32 %v1767, 0.5
    %v1784 = vmul.f32 %v1768, 0.5
    %v1785 = vmul.f32 %v1769, 0.5
    %v1786 = vmul.f32 %v1770, 0.5
    %v1787 = vmul.f32 %v1771, 0.5
    %v1788 = vmul.f32 %v1772, 0.5
    %v1789 = vmul.f32 %v1773, 0.5
    %v1790 = vmul.f32 %v1774, 0.5
    %v1791 = vmul.f32 %v1775, 0.5
    %v1792 = vadd.f32 %v1776, 0.5
    %v1793 = vadd.f32 %v1777, 0.5
    %v1794 = vadd.f32 %v1778, 0.5
    %v1795 = vadd.f32 %v1779, 0.5
    %v1796 = vadd.f32 %v1780, 0.5
    %v1797 = vadd.f32 %v1781, 0.5
    %v1798 = vadd.f32 %v1782, 0.5
    %v1799 = vadd.f32 %v1783, 0.5
    %v1800 = vadd.f32 %v1784, 0.5
    %v1801 = vadd.f32 %v1785, 0.5
    %v1802 = vadd.f32 %v1786, 0.5
    %v1803 = vadd.f32 %v1787, 0.5
    %v1804 = vadd.f32 %v1788, 0.5
    %v1805 = vadd.f32 %v1789, 0.5
    %v1806 = vadd.f32 %v1790, 0.5
    %v1807 = vadd.f32 %v1791, 0.5
    %v1808 = vmul.f32 %v1682, %v1792
    %v1809 = vmul.f32 %v1685, %v1793
    %v1810 = vmul.f32 %v1690, %v1794
    %v1811 = vmul.f32 %v1693, %v1795
    %v1812 = vmul.f32 %v1698, %v1796
    %v1813 = vmul.f32 %v1701, %v1797
    %v1814 = vmul.f32 %v1706, %v1798
    %v1815 = vmul.f32 %v1709, %v1799
    %v1816 = vmul.f32 %v1714, %v1800
    %v1817 = vmul.f32 %v1717, %v1801
    %v1818 = vmul.f32 %v1722, %v1802
    %v1819 = vmul.f32 %v1725, %v1803
    %v1820 = vmul.f32 %v1730, %v1804
    %v1821 = vmul.f32 %v1733, %v1805
    %v1822 = vmul.f32 %v1738, %v1806
    %v1823 = vmul.f32 %v1741, %v1807
    %1824 = vxpose.xlu0.b32.start [1/16] %v1808, 128
    %1825 = vxpose.xlu0.b32.cont [2/16] %v1809, 128
    %1826 = vxpose.xlu0.b32.cont [3/16] %v1810, 128
    %1827 = vxpose.xlu0.b32.cont [4/16] %v1811, 128
    %1828 = vxpose.xlu0.b32.cont [5/16] %v1812, 128
    %1829 = vxpose.xlu0.b32.cont [6/16] %v1813, 128
    %1830 = vxpose.xlu0.b32.cont [7/16] %v1814, 128
    %1831 = vxpose.xlu0.b32.cont [8/16] %v1815, 128
    %1832 = vxpose.xlu0.b32.cont [9/16] %v1816, 128
    %1833 = vxpose.xlu0.b32.cont [10/16] %v1817, 128
    %1834 = vxpose.xlu0.b32.cont [11/16] %v1818, 128
    %1835 = vxpose.xlu0.b32.cont [12/16] %v1819, 128
    %1836 = vxpose.xlu0.b32.cont [13/16] %v1820, 128
    %1837 = vxpose.xlu0.b32.cont [14/16] %v1821, 128
    %1838 = vxpose.xlu0.b32.cont [15/16] %v1822, 128
    %1839 = vxpose.xlu0.b32.end [16/16] %v1823, 128
    %v1840 = vpop.trf.xlu0
    %v1841 = vpop.trf.xlu0
    %v1842 = vpop.trf.xlu0
    %v1843 = vpop.trf.xlu0
    %v1844 = vpop.trf.xlu0
    %v1845 = vpop.trf.xlu0
    %v1846 = vpop.trf.xlu0
    %v1847 = vpop.trf.xlu0
    %v1848 = vpop.trf.xlu0
    %v1849 = vpop.trf.xlu0
    %v1850 = vpop.trf.xlu0
    %v1851 = vpop.trf.xlu0
    %v1852 = vpop.trf.xlu0
    %v1853 = vpop.trf.xlu0
    %v1854 = vpop.trf.xlu0
    %v1855 = vpop.trf.xlu0
    %1856 = vst [vmem:[%s16] sm:$0x1] %v1840
    // Predicated region
    $region78: #{forward.2} parent=1 // pred_check
      _
    $region79: #{forward.2} parent=1 // pred_check_branch
      %1858 = sbr.rel (0) target = $region81
    $region80: #{forward.2} parent=1 // pred_region
      _
    $region81: #{forward.2} parent=1 // pred_fallthru
      _
    // Predicated region
    $region82: #{forward.2} parent=1 // pred_check
      _
    $region83: #{forward.2} parent=1 // pred_check_branch
      %1860 = sbr.rel (0) target = $region85
    $region84: #{forward.2} parent=1 // pred_region
      _
    $region85: #{forward.2} parent=1 // pred_fallthru
      _
    %1861 = vsyncpa [#allocation18], 1
    %1862 = vsyncpa [#allocation20], 1
    %1863 = vsyncpa [#allocation23], 1

</llo_original>
